<compile_context>
chip_gen: v7x
topology: tpu7x:2x2x1
jax: 0.10.0
libtpu: 0.0.40
codegen_flags: <defaults>
</compile_context>

<pallas_src>
import functools
import math

import jax
import jax.numpy as jnp
from jax.experimental import pallas as pl
from jax.experimental.pallas import tpu as pltpu


SUBLANE = 8        # f32 sublane tile
LANE = 128         # lane width


def _round_up(x, m):
    return (x + m - 1) // m * m


def _cdiv(a, b):
    return -(-a // b)


def _gru_chunk_kernel(x_ref, h0_ref, wi_ref, whrz_ref, whn_ref, bi_ref, bhn_ref,
                      hseq_ref, hn_ref, xp_ref,
                      *, hpad, seq_len, mask_tail, unroll):
    """One (batch_block, time_chunk) grid step of the fused GRU recurrence.

    x_ref    : (T, b_blk, E)     time-major embedded inputs (f32)
    h0_ref   : (b_blk, Hp)       initial hidden state for this batch block (f32)
    wi_ref   : (E, 3*Hp)         packed [W_ir^T | W_iz^T | W_in^T]   (compute dtype)
    whrz_ref : (Hp, 2*Hp)        packed [W_hr^T | W_hz^T]            (compute dtype)
    whn_ref  : (Hp, Hp)          W_hn^T                              (compute dtype)
    bi_ref   : (1, 1, 3*Hp)      [b_ir+b_hr | b_iz+b_hz | b_in]      (f32)
    bhn_ref  : (1, Hp)           b_hn (must stay inside r*(...))     (f32)
    hseq_ref : (T, b_blk, Hp)    per-step hidden states (output, f32)
    hn_ref   : (b_blk, Hp)       running / final hidden state (resident output)
    xp_ref   : (T, b_blk, 3*Hp)  VMEM scratch: chunk input pre-activations (f32)
    """
    t_chunk = x_ref.shape[0]
    b_blk = x_ref.shape[1]
    e_dim = x_ref.shape[2]
    tc = pl.program_id(1)

    # First time chunk of this batch block: seed the resident hidden state.
    @pl.when(tc == 0)
    def _():
        hn_ref[...] = h0_ref[...]

    w_dtype = whrz_ref.dtype

    # ---- chunk-level fused input projection: one big MXU matmul per chunk ----
    x2 = x_ref[...].reshape(t_chunk * b_blk, e_dim).astype(w_dtype)
    xp2 = jnp.dot(x2, wi_ref[...], preferred_element_type=jnp.float32)
    xp_ref[...] = xp2.reshape(t_chunk, b_blk, 3 * hpad) + bi_ref[...]

    bhn = bhn_ref[...]                     # (1, Hp), hoisted out of the loop
    t_base = tc * t_chunk

    def step(t, h):
        h_lo = h.astype(w_dtype)
        # r/z slab: one (b_blk, Hp) @ (Hp, 2Hp) matmul, consumed immediately.
        pre_rz = xp_ref[t, :, :2 * hpad] + jnp.dot(
            h_lo, whrz_ref[...], preferred_element_type=jnp.float32)
        rz = jax.nn.sigmoid(pre_rz)
        r = rz[:, :hpad]
        z = rz[:, hpad:]
        # n slab: b_hn must stay inside the r*(...) term (PyTorch GRU semantics).
        hp_n = jnp.dot(h_lo, whn_ref[...], preferred_element_type=jnp.float32)
        n = jnp.tanh(xp_ref[t, :, 2 * hpad:] + r * (hp_n + bhn))
        h_new = (1.0 - z) * n + z * h
        if mask_tail:
            # Identity update on padded tail timesteps of the last chunk.
            h_new = jnp.where(t_base + t < seq_len, h_new, h)
        hseq_ref[t] = h_new
        return h_new

    h_last = jax.lax.fori_loop(0, t_chunk, step, hn_ref[...], unroll=unroll)
    hn_ref[...] = h_last


def _vmem_estimate(t_chunk, b_blk, e_dim, hpad, w_bytes):
    """Rough per-grid-step VMEM footprint (includes double buffering & temps)."""
    gh = 3 * hpad
    f32 = 4
    b = 2 * t_chunk * b_blk * e_dim * f32        # x input blocks
    b += 2 * t_chunk * b_blk * hpad * f32        # hseq output blocks
    b += 4 * b_blk * hpad * f32                  # h0 input + hn output
    b += 2 * (e_dim * gh + hpad * gh) * w_bytes  # wi + wh_rz + wh_n
    b += 2 * (gh + hpad) * f32                   # biases
    b += 2 * t_chunk * b_blk * gh * f32          # xp scratch + projection temp
    return b


@functools.partial(jax.jit,
                   static_argnames=("t_chunk", "compute_dtype", "max_b_blk"))
def decoder_rnn_forward(x, h0, params, *, t_chunk=64,
                        compute_dtype=jnp.bfloat16, max_b_blk=128):
    """Teacher-forced GRU recurrence of Decoder.do_decode_tc.

    x      : (B, S, E)  embedded (and dropout'ed) target tokens, batch_first
    h0     : (B, H)     initial hidden state = tanh(ses_to_dec(ses_encoding))
    params : PyTorch-style GRU weights (w{i,h}{r,z,n}, b{i,h}{r,z,n})

    Returns (hid_o, h_n):
      hid_o : (S, B, H) per-step hidden states (time-major; downstream
              projections are position-wise so no relayout is needed)
      h_n   : (B, 1, H) final hidden state (matches h_n.view(B, -1, H))
    """
    B, S, E = x.shape
    H = params["whr"].shape[0]

    f32 = jnp.float32
    w_bytes = jnp.dtype(compute_dtype).itemsize

    # ---- generation-aware tile selection -----------------------------------
    vmem_cap = 64 * 1024 * 1024                 # conservative fallback (v7x-sized)
    try:
        vmem_cap = int(pltpu.get_tpu_info().vmem_capacity_bytes)
    except Exception:
        pass
    vmem_budget = int(vmem_cap * 0.7)           # headroom for compiler temporaries

    b_blk = min(_round_up(B, SUBLANE), _round_up(max_b_blk, SUBLANE))
    Bp = _round_up(B, b_blk)
    n_bb = Bp // b_blk

    Hp = _round_up(H, LANE)
    GH = 3 * Hp

    # Pick T so Sp padding is < n_tc, then shrink until VMEM fits.
    n_tc = max(1, _cdiv(S, t_chunk))
    T = _cdiv(S, n_tc)
    while T > 1 and _vmem_estimate(T, b_blk, E, Hp, w_bytes) > vmem_budget:
        n_tc += 1
        T = _cdiv(S, n_tc)
    Sp = n_tc * T
    mask_tail = Sp != S

    vmem_limit = int(min(vmem_cap * 9 // 10,
                         max(2 * _vmem_estimate(T, b_blk, E, Hp, w_bytes),
                             32 * 1024 * 1024)))

    # ---- pack input-side weights / biases (gate slabs 128-lane aligned) ----
    wi = jnp.zeros((E, GH), compute_dtype)
    wi = wi.at[:, 0:H].set(params["wir"].T.astype(compute_dtype))
    wi = wi.at[:, Hp:Hp + H].set(params["wiz"].T.astype(compute_dtype))
    wi = wi.at[:, 2 * Hp:2 * Hp + H].set(params["win"].T.astype(compute_dtype))

    bi = jnp.zeros((1, 1, GH), f32)
    bi = bi.at[0, 0, 0:H].set(params["bir"] + params["bhr"])        # r bias folded
    bi = bi.at[0, 0, Hp:Hp + H].set(params["biz"] + params["bhz"])  # z bias folded
    bi = bi.at[0, 0, 2 * Hp:2 * Hp + H].set(params["bin"])          # b_hn kept apart

    # ---- pack hidden-side weights: r/z slab and n slab as separate operands ----
    whrz = jnp.zeros((Hp, 2 * Hp), compute_dtype)
    whrz = whrz.at[:H, 0:H].set(params["whr"].T.astype(compute_dtype))
    whrz = whrz.at[:H, Hp:Hp + H].set(params["whz"].T.astype(compute_dtype))
    whn = jnp.zeros((Hp, Hp), compute_dtype)
    whn = whn.at[:H, :H].set(params["whn"].T.astype(compute_dtype))

    bhn = jnp.zeros((1, Hp), f32).at[0, :H].set(params["bhn"])

    # ---- time-major, padded inputs ------------------------------------------
    x_tm = jnp.transpose(x, (1, 0, 2)).astype(f32)                  # (S, B, E)
    if (Sp, Bp) != (S, B):
        x_tm = jnp.zeros((Sp, Bp, E), f32).at[:S, :B, :].set(x_tm)
    h0p = jnp.zeros((Bp, Hp), f32).at[:B, :H].set(h0.reshape(B, H).astype(f32))

    kernel = functools.partial(_gru_chunk_kernel, hpad=Hp, seq_len=S,
                               mask_tail=mask_tail, unroll=min(8, T))

    hseq_pad, hn_pad = pl.pallas_call(
        kernel,
        out_shape=(
            jax.ShapeDtypeStruct((Sp, Bp, Hp), f32),
            jax.ShapeDtypeStruct((Bp, Hp), f32),
        ),
        grid_spec=pltpu.PrefetchScalarGridSpec(
            num_scalar_prefetch=0,
            grid=(n_bb, n_tc),
            in_specs=[
                pl.BlockSpec((T, b_blk, E), lambda bb, tc: (tc, bb, 0)),    # x
                pl.BlockSpec((b_blk, Hp), lambda bb, tc: (bb, 0)),          # h0
                pl.BlockSpec((E, GH), lambda bb, tc: (0, 0)),               # W_i packed
                pl.BlockSpec((Hp, 2 * Hp), lambda bb, tc: (0, 0)),          # W_h r/z
                pl.BlockSpec((Hp, Hp), lambda bb, tc: (0, 0)),              # W_h n
                pl.BlockSpec((1, 1, GH), lambda bb, tc: (0, 0, 0)),         # b_i (+ b_hr/z)
                pl.BlockSpec((1, Hp), lambda bb, tc: (0, 0)),               # b_hn
            ],
            out_specs=[
                pl.BlockSpec((T, b_blk, Hp), lambda bb, tc: (tc, bb, 0)),   # hid seq
                pl.BlockSpec((b_blk, Hp), lambda bb, tc: (bb, 0)),          # h_n (resident)
            ],
            scratch_shapes=[pltpu.VMEM((T, b_blk, GH), jnp.float32)],
        ),
        compiler_params=pltpu.CompilerParams(
            dimension_semantics=("parallel", "arbitrary"),
            vmem_limit_bytes=vmem_limit,
        ),
    )(x_tm, h0p, wi, whrz, whn, bi, bhn)

    hid_o = hseq_pad[:S, :B, :H]                 # (S, B, H), time-major
    h_n = hn_pad[:B, :H].reshape(B, 1, H)
    return hid_o, h_n


def make_gru_params(key, inp_size, hid_size):
    """PyTorch-style GRU init: uniform(-1/sqrt(H), 1/sqrt(H))."""
    k = 1.0 / math.sqrt(hid_size)
    keys = jax.random.split(key, 12)
    u = lambda kk, shape: jax.random.uniform(kk, shape, jnp.float32, -k, k)
    return {
        "wir": u(keys[0], (hid_size, inp_size)),
        "wiz": u(keys[1], (hid_size, inp_size)),
        "win": u(keys[2], (hid_size, inp_size)),
        "whr": u(keys[3], (hid_size, hid_size)),
        "whz": u(keys[4], (hid_size, hid_size)),
        "whn": u(keys[5], (hid_size, hid_size)),
        "bir": u(keys[6], (hid_size,)),
        "biz": u(keys[7], (hid_size,)),
        "bin": u(keys[8], (hid_size,)),
        "bhr": u(keys[9], (hid_size,)),
        "bhz": u(keys[10], (hid_size,)),
        "bhn": u(keys[11], (hid_size,)),
    }


def gru_reference(x, h0, params):
    """Pure-JAX reference (lax.scan over time), PyTorch GRU semantics."""
    def step(h, x_t):
        r = jax.nn.sigmoid(x_t @ params["wir"].T + params["bir"]
                           + h @ params["whr"].T + params["bhr"])
        z = jax.nn.sigmoid(x_t @ params["wiz"].T + params["biz"]
                           + h @ params["whz"].T + params["bhz"])
        n = jnp.tanh(x_t @ params["win"].T + params["bin"]
                     + r * (h @ params["whn"].T + params["bhn"]))
        h_new = (1.0 - z) * n + z * h
        return h_new, h_new

    h_final, hs = jax.lax.scan(step, h0, jnp.transpose(x, (1, 0, 2)))
    return hs, h_final   # hs: (S, B, H) time-major


if __name__ == "__main__":
    key = jax.random.PRNGKey(0)
    B, S = 2, 8                 # batch, target sequence length
    EMB, HID, SES_HID = 16, 32, 24

    k_emb, k_ses, k_s2d, k_gru = jax.random.split(key, 4)

    # Stand-in for drop(embed_in(target)) — teacher-forced target embeddings
    # (dropout is identity at inference; nn.GRU dropout is a no-op for 1 layer).
    target_emb = jax.random.normal(k_emb, (B, S, EMB), dtype=jnp.float32)
    ses_encoding = jax.random.normal(k_ses, (B, 1, SES_HID), dtype=jnp.float32)

    params = make_gru_params(k_gru, EMB, HID)

    # init_hidn = tanh(ses_to_dec(ses_encoding)), as in Decoder.do_decode_tc.
    k1, k2 = jax.random.split(k_s2d)
    lim = 1.0 / math.sqrt(SES_HID)
    w_s2d = jax.random.uniform(k1, (HID, SES_HID), jnp.float32, -lim, lim)
    b_s2d = jax.random.uniform(k2, (HID,), jnp.float32, -lim, lim)
    init_hidn = jnp.tanh(ses_encoding.reshape(B, SES_HID) @ w_s2d.T + b_s2d)

    # bf16 MXU path (production default): f32 accumulation, f32 gate math/carry.
    hid_o, h_n = decoder_rnn_forward(target_emb, init_hidn, params)
    hid_o, h_n = jax.block_until_ready((hid_o, h_n))

    # f32 compute path for tight numerical validation of the recurrence.
    hid_o32, h_n32 = decoder_rnn_forward(target_emb, init_hidn, params,
                                         compute_dtype=jnp.float32)
    # Exercise multi-chunk + ragged-tail masking (S=8, T=3 -> Sp=9).
    hid_o32b, h_n32b = decoder_rnn_forward(target_emb, init_hidn, params,
                                           compute_dtype=jnp.float32, t_chunk=3)
    hid_o32, h_n32, hid_o32b, h_n32b = jax.block_until_ready(
        (hid_o32, h_n32, hid_o32b, h_n32b))

    hid_ref, h_last_ref = gru_reference(target_emb, init_hidn, params)
    h_ref_n = h_last_ref.reshape(B, 1, HID)

    assert hid_o.shape == (S, B, HID)
    assert h_n.shape == (B, 1, HID)
    # f32 path: tight tolerance.
    assert jnp.allclose(hid_o32, hid_ref, atol=2e-5, rtol=2e-5), "f32 hid_o mismatch"
    assert jnp.allclose(h_n32, h_ref_n, atol=2e-5, rtol=2e-5), "f32 h_n mismatch"
    assert jnp.allclose(hid_o32b, hid_ref, atol=2e-5, rtol=2e-5), "chunked hid_o mismatch"
    assert jnp.allclose(h_n32b, h_ref_n, atol=2e-5, rtol=2e-5), "chunked h_n mismatch"
    # bf16 matmul path: relaxed tolerance (f32 accumulate preserves most accuracy).
    assert jnp.allclose(hid_o, hid_ref, atol=5e-2, rtol=5e-2), "bf16 hid_o mismatch"
    assert jnp.allclose(h_n, h_ref_n, atol=5e-2, rtol=5e-2), "bf16 h_n mismatch"

    print("KERNEL_OK")
</pallas_src>

<mosaic_0001>
module attributes {stable_mosaic.version = 11 : i64} {
  func.func @_gru_chunk_kernel(%arg0: i32, %arg1: i32, %arg2: memref<8x8x16xf32, #tpu.memory_space<vmem>>, %arg3: memref<8x128xf32, #tpu.memory_space<vmem>>, %arg4: memref<16x384xbf16, #tpu.memory_space<vmem>>, %arg5: memref<128x256xbf16, #tpu.memory_space<vmem>>, %arg6: memref<128x128xbf16, #tpu.memory_space<vmem>>, %arg7: memref<1x1x384xf32, #tpu.memory_space<vmem>>, %arg8: memref<1x128xf32, #tpu.memory_space<vmem>>, %arg9: memref<8x8x128xf32, #tpu.memory_space<vmem>>, %arg10: memref<8x128xf32, #tpu.memory_space<vmem>>, %arg11: memref<8x8x384xf32, #tpu.memory_space<vmem>>) attributes {dimension_semantics = [#tpu.dimension_semantics<parallel>, #tpu.dimension_semantics<arbitrary>], iteration_bounds = array<i64: 1, 1>, scalar_prefetch = 0 : i64, scratch_operands = 1 : i64, tpu.core_type = #tpu.core_type<tc>, window_params = [{transform_indices = @transform_0, window_bounds = array<i64: 8, 8, 16>}, {transform_indices = @transform_1, window_bounds = array<i64: 8, 128>}, {pipeline_mode = #tpu.pipeline_mode<synchronous>, transform_indices = @transform_2, window_bounds = array<i64: 16, 384>}, {pipeline_mode = #tpu.pipeline_mode<synchronous>, transform_indices = @transform_3, window_bounds = array<i64: 128, 256>}, {pipeline_mode = #tpu.pipeline_mode<synchronous>, transform_indices = @transform_4, window_bounds = array<i64: 128, 128>}, {pipeline_mode = #tpu.pipeline_mode<synchronous>, transform_indices = @transform_5, window_bounds = array<i64: 1, 1, 384>}, {pipeline_mode = #tpu.pipeline_mode<synchronous>, transform_indices = @transform_6, window_bounds = array<i64: 1, 128>}, {transform_indices = @transform_7, window_bounds = array<i64: 8, 8, 128>}, {transform_indices = @transform_8, window_bounds = array<i64: 8, 128>}]} {
    %c0_i32 = arith.constant 0 : i32
    %0 = arith.cmpi eq, %arg1, %c0_i32 : i32
    %1 = arith.extui %0 : i1 to i32
    %c0_i32_0 = arith.constant 0 : i32
    %2 = arith.cmpi ne, %1, %c0_i32_0 : i32
    scf.if %2 {
      %c0_129 = arith.constant 0 : index
      %c0_130 = arith.constant 0 : index
      %280 = vector.load %arg3[%c0_129, %c0_130] : memref<8x128xf32, #tpu.memory_space<vmem>>, vector<8x128xf32>
      %c0_131 = arith.constant 0 : index
      %c0_132 = arith.constant 0 : index
      %281 = vector.load %arg10[%c0_131, %c0_132] : memref<8x128xf32, #tpu.memory_space<vmem>>, vector<8x128xf32>
      tpu.vector_store %arg10[%c0_131, %c0_132], %280 {strides = array<i32>} : memref<8x128xf32, #tpu.memory_space<vmem>>, vector<8x128xf32>,
    } else {
    }
    %c0 = arith.constant 0 : index
    %c0_1 = arith.constant 0 : index
    %c0_2 = arith.constant 0 : index
    %3 = vector.load %arg2[%c0, %c0_1, %c0_2] : memref<8x8x16xf32, #tpu.memory_space<vmem>>, vector<8x8x16xf32>
    %4 = vector.shape_cast %3 : vector<8x8x16xf32> to vector<64x16xf32>
    %5 = arith.truncf %4 : vector<64x16xf32> to vector<64x16xbf16>
    %c0_3 = arith.constant 0 : index
    %c0_4 = arith.constant 0 : index
    %6 = vector.load %arg4[%c0_3, %c0_4] : memref<16x384xbf16, #tpu.memory_space<vmem>>, vector<16x384xbf16>
    %cst = arith.constant dense<0.000000e+00> : vector<64x384xf32>
    %7 = tpu.matmul %5, %6, %cst {dimension_numbers = #tpu.dot_dimension_numbers<[1], [0], [0], [1], [0, 0, 1, 1], [], []>} : vector<64x16xbf16>, vector<16x384xbf16>, vector<64x384xf32> -> vector<64x384xf32>
    %8 = vector.shape_cast %7 : vector<64x384xf32> to vector<8x8x384xf32>
    %c0_5 = arith.constant 0 : index
    %c0_6 = arith.constant 0 : index
    %c0_7 = arith.constant 0 : index
    %9 = vector.load %arg7[%c0_5, %c0_6, %c0_7] : memref<1x1x384xf32, #tpu.memory_space<vmem>>, vector<1x1x384xf32>
    %10 = vector.broadcast %9 : vector<1x1x384xf32> to vector<8x8x384xf32>
    %11 = arith.addf %8, %10 : vector<8x8x384xf32>
    %c0_8 = arith.constant 0 : index
    %c0_9 = arith.constant 0 : index
    %c0_10 = arith.constant 0 : index
    %12 = vector.load %arg11[%c0_8, %c0_9, %c0_10] : memref<8x8x384xf32, #tpu.memory_space<vmem>>, vector<8x8x384xf32>
    tpu.vector_store %arg11[%c0_8, %c0_9, %c0_10], %11 {strides = array<i32>} : memref<8x8x384xf32, #tpu.memory_space<vmem>>, vector<8x8x384xf32>,
    %c0_11 = arith.constant 0 : index
    %c0_12 = arith.constant 0 : index
    %13 = vector.load %arg8[%c0_11, %c0_12] : memref<1x128xf32, #tpu.memory_space<vmem>>, vector<1x128xf32>
    %c0_13 = arith.constant 0 : index
    %c0_14 = arith.constant 0 : index
    %14 = vector.load %arg10[%c0_13, %c0_14] : memref<8x128xf32, #tpu.memory_space<vmem>>, vector<8x128xf32>
    %c0_i32_15 = arith.constant 0 : i32
    %15 = arith.truncf %14 : vector<8x128xf32> to vector<8x128xbf16>
    %16 = arith.index_cast %c0_i32_15 : i32 to index
    %c0_16 = arith.constant 0 : index
    %c0_17 = arith.constant 0 : index
    %17 = vector.load %arg11[%16, %c0_16, %c0_17] : memref<8x8x384xf32, #tpu.memory_space<vmem>>, vector<1x8x256xf32>
    %18 = vector.shape_cast %17 : vector<1x8x256xf32> to vector<8x256xf32>
    %c0_18 = arith.constant 0 : index
    %c0_19 = arith.constant 0 : index
    %19 = vector.load %arg5[%c0_18, %c0_19] : memref<128x256xbf16, #tpu.memory_space<vmem>>, vector<128x256xbf16>
    %cst_20 = arith.constant dense<0.000000e+00> : vector<8x256xf32>
    %20 = tpu.matmul %15, %19, %cst_20 {dimension_numbers = #tpu.dot_dimension_numbers<[1], [0], [0], [1], [0, 0, 1, 1], [], []>} : vector<8x128xbf16>, vector<128x256xbf16>, vector<8x256xf32> -> vector<8x256xf32>
    %21 = arith.addf %18, %20 : vector<8x256xf32>
    %22 = arith.negf %21 : vector<8x256xf32>
    %23 = math.exp %22 : vector<8x256xf32>
    %cst_21 = arith.constant 1.000000e+00 : f32
    %24 = vector.broadcast %cst_21 : f32 to vector<8x256xf32>
    %25 = arith.addf %24, %23 : vector<8x256xf32>
    %26 = arith.divf %24, %25 : vector<8x256xf32>
    %27 = vector.extract_strided_slice %26 {offsets = [0, 0], sizes = [8, 128], strides = [1, 1]} : vector<8x256xf32> to vector<8x128xf32>
    %28 = vector.extract_strided_slice %26 {offsets = [0, 128], sizes = [8, 128], strides = [1, 1]} : vector<8x256xf32> to vector<8x128xf32>
    %c0_22 = arith.constant 0 : index
    %c0_23 = arith.constant 0 : index
    %29 = vector.load %arg6[%c0_22, %c0_23] : memref<128x128xbf16, #tpu.memory_space<vmem>>, vector<128x128xbf16>
    %cst_24 = arith.constant dense<0.000000e+00> : vector<8x128xf32>
    %30 = tpu.matmul %15, %29, %cst_24 {dimension_numbers = #tpu.dot_dimension_numbers<[1], [0], [0], [1], [0, 0, 1, 1], [], []>} : vector<8x128xbf16>, vector<128x128xbf16>, vector<8x128xf32> -> vector<8x128xf32>
    %31 = arith.index_cast %c0_i32_15 : i32 to index
    %c0_25 = arith.constant 0 : index
    %c256 = arith.constant 256 : index
    %32 = vector.load %arg11[%31, %c0_25, %c256] : memref<8x8x384xf32, #tpu.memory_space<vmem>>, vector<1x8x128xf32>
    %33 = vector.shape_cast %32 : vector<1x8x128xf32> to vector<8x128xf32>
    %34 = vector.broadcast %13 : vector<1x128xf32> to vector<8x128xf32>
    %35 = arith.addf %30, %34 : vector<8x128xf32>
    %36 = arith.mulf %27, %35 : vector<8x128xf32>
    %37 = arith.addf %33, %36 : vector<8x128xf32>
    %38 = math.tanh %37 : vector<8x128xf32>
    %cst_26 = arith.constant 1.000000e+00 : f32
    %39 = vector.broadcast %cst_26 : f32 to vector<8x128xf32>
    %40 = arith.subf %39, %28 : vector<8x128xf32>
    %41 = arith.mulf %40, %38 : vector<8x128xf32>
    %42 = arith.mulf %28, %14 : vector<8x128xf32>
    %43 = arith.addf %41, %42 : vector<8x128xf32>
    %44 = arith.index_cast %c0_i32_15 : i32 to index
    %c0_27 = arith.constant 0 : index
    %c0_28 = arith.constant 0 : index
    %45 = vector.load %arg9[%44, %c0_27, %c0_28] : memref<8x8x128xf32, #tpu.memory_space<vmem>>, vector<1x8x128xf32>
    %46 = vector.shape_cast %45 : vector<1x8x128xf32> to vector<8x128xf32>
    %47 = vector.shape_cast %43 : vector<8x128xf32> to vector<1x8x128xf32>
    tpu.vector_store %arg9[%44, %c0_27, %c0_28], %47 {strides = array<i32>} : memref<8x8x128xf32, #tpu.memory_space<vmem>>, vector<1x8x128xf32>,
    %c1_i32 = arith.constant 1 : i32
    %48 = arith.truncf %43 : vector<8x128xf32> to vector<8x128xbf16>
    %49 = arith.index_cast %c1_i32 : i32 to index
    %c0_29 = arith.constant 0 : index
    %c0_30 = arith.constant 0 : index
    %50 = vector.load %arg11[%49, %c0_29, %c0_30] : memref<8x8x384xf32, #tpu.memory_space<vmem>>, vector<1x8x256xf32>
    %51 = vector.shape_cast %50 : vector<1x8x256xf32> to vector<8x256xf32>
    %c0_31 = arith.constant 0 : index
    %c0_32 = arith.constant 0 : index
    %52 = vector.load %arg5[%c0_31, %c0_32] : memref<128x256xbf16, #tpu.memory_space<vmem>>, vector<128x256xbf16>
    %cst_33 = arith.constant dense<0.000000e+00> : vector<8x256xf32>
    %53 = tpu.matmul %48, %52, %cst_33 {dimension_numbers = #tpu.dot_dimension_numbers<[1], [0], [0], [1], [0, 0, 1, 1], [], []>} : vector<8x128xbf16>, vector<128x256xbf16>, vector<8x256xf32> -> vector<8x256xf32>
    %54 = arith.addf %51, %53 : vector<8x256xf32>
    %55 = arith.negf %54 : vector<8x256xf32>
    %56 = math.exp %55 : vector<8x256xf32>
    %cst_34 = arith.constant 1.000000e+00 : f32
    %57 = vector.broadcast %cst_34 : f32 to vector<8x256xf32>
    %58 = arith.addf %57, %56 : vector<8x256xf32>
    %59 = arith.divf %57, %58 : vector<8x256xf32>
    %60 = vector.extract_strided_slice %59 {offsets = [0, 0], sizes = [8, 128], strides = [1, 1]} : vector<8x256xf32> to vector<8x128xf32>
    %61 = vector.extract_strided_slice %59 {offsets = [0, 128], sizes = [8, 128], strides = [1, 1]} : vector<8x256xf32> to vector<8x128xf32>
    %c0_35 = arith.constant 0 : index
    %c0_36 = arith.constant 0 : index
    %62 = vector.load %arg6[%c0_35, %c0_36] : memref<128x128xbf16, #tpu.memory_space<vmem>>, vector<128x128xbf16>
    %cst_37 = arith.constant dense<0.000000e+00> : vector<8x128xf32>
    %63 = tpu.matmul %48, %62, %cst_37 {dimension_numbers = #tpu.dot_dimension_numbers<[1], [0], [0], [1], [0, 0, 1, 1], [], []>} : vector<8x128xbf16>, vector<128x128xbf16>, vector<8x128xf32> -> vector<8x128xf32>
    %64 = arith.index_cast %c1_i32 : i32 to index
    %c0_38 = arith.constant 0 : index
    %c256_39 = arith.constant 256 : index
    %65 = vector.load %arg11[%64, %c0_38, %c256_39] : memref<8x8x384xf32, #tpu.memory_space<vmem>>, vector<1x8x128xf32>
    %66 = vector.shape_cast %65 : vector<1x8x128xf32> to vector<8x128xf32>
    %67 = vector.broadcast %13 : vector<1x128xf32> to vector<8x128xf32>
    %68 = arith.addf %63, %67 : vector<8x128xf32>
    %69 = arith.mulf %60, %68 : vector<8x128xf32>
    %70 = arith.addf %66, %69 : vector<8x128xf32>
    %71 = math.tanh %70 : vector<8x128xf32>
    %cst_40 = arith.constant 1.000000e+00 : f32
    %72 = vector.broadcast %cst_40 : f32 to vector<8x128xf32>
    %73 = arith.subf %72, %61 : vector<8x128xf32>
    %74 = arith.mulf %73, %71 : vector<8x128xf32>
    %75 = arith.mulf %61, %43 : vector<8x128xf32>
    %76 = arith.addf %74, %75 : vector<8x128xf32>
    %77 = arith.index_cast %c1_i32 : i32 to index
    %c0_41 = arith.constant 0 : index
    %c0_42 = arith.constant 0 : index
    %78 = vector.load %arg9[%77, %c0_41, %c0_42] : memref<8x8x128xf32, #tpu.memory_space<vmem>>, vector<1x8x128xf32>
    %79 = vector.shape_cast %78 : vector<1x8x128xf32> to vector<8x128xf32>
    %80 = vector.shape_cast %76 : vector<8x128xf32> to vector<1x8x128xf32>
    tpu.vector_store %arg9[%77, %c0_41, %c0_42], %80 {strides = array<i32>} : memref<8x8x128xf32, #tpu.memory_space<vmem>>, vector<1x8x128xf32>,
    %c2_i32 = arith.constant 2 : i32
    %81 = arith.truncf %76 : vector<8x128xf32> to vector<8x128xbf16>
    %82 = arith.index_cast %c2_i32 : i32 to index
    %c0_43 = arith.constant 0 : index
    %c0_44 = arith.constant 0 : index
    %83 = vector.load %arg11[%82, %c0_43, %c0_44] : memref<8x8x384xf32, #tpu.memory_space<vmem>>, vector<1x8x256xf32>
    %84 = vector.shape_cast %83 : vector<1x8x256xf32> to vector<8x256xf32>
    %c0_45 = arith.constant 0 : index
    %c0_46 = arith.constant 0 : index
    %85 = vector.load %arg5[%c0_45, %c0_46] : memref<128x256xbf16, #tpu.memory_space<vmem>>, vector<128x256xbf16>
    %cst_47 = arith.constant dense<0.000000e+00> : vector<8x256xf32>
    %86 = tpu.matmul %81, %85, %cst_47 {dimension_numbers = #tpu.dot_dimension_numbers<[1], [0], [0], [1], [0, 0, 1, 1], [], []>} : vector<8x128xbf16>, vector<128x256xbf16>, vector<8x256xf32> -> vector<8x256xf32>
    %87 = arith.addf %84, %86 : vector<8x256xf32>
    %88 = arith.negf %87 : vector<8x256xf32>
    %89 = math.exp %88 : vector<8x256xf32>
    %cst_48 = arith.constant 1.000000e+00 : f32
    %90 = vector.broadcast %cst_48 : f32 to vector<8x256xf32>
    %91 = arith.addf %90, %89 : vector<8x256xf32>
    %92 = arith.divf %90, %91 : vector<8x256xf32>
    %93 = vector.extract_strided_slice %92 {offsets = [0, 0], sizes = [8, 128], strides = [1, 1]} : vector<8x256xf32> to vector<8x128xf32>
    %94 = vector.extract_strided_slice %92 {offsets = [0, 128], sizes = [8, 128], strides = [1, 1]} : vector<8x256xf32> to vector<8x128xf32>
    %c0_49 = arith.constant 0 : index
    %c0_50 = arith.constant 0 : index
    %95 = vector.load %arg6[%c0_49, %c0_50] : memref<128x128xbf16, #tpu.memory_space<vmem>>, vector<128x128xbf16>
    %cst_51 = arith.constant dense<0.000000e+00> : vector<8x128xf32>
    %96 = tpu.matmul %81, %95, %cst_51 {dimension_numbers = #tpu.dot_dimension_numbers<[1], [0], [0], [1], [0, 0, 1, 1], [], []>} : vector<8x128xbf16>, vector<128x128xbf16>, vector<8x128xf32> -> vector<8x128xf32>
    %97 = arith.index_cast %c2_i32 : i32 to index
    %c0_52 = arith.constant 0 : index
    %c256_53 = arith.constant 256 : index
    %98 = vector.load %arg11[%97, %c0_52, %c256_53] : memref<8x8x384xf32, #tpu.memory_space<vmem>>, vector<1x8x128xf32>
    %99 = vector.shape_cast %98 : vector<1x8x128xf32> to vector<8x128xf32>
    %100 = vector.broadcast %13 : vector<1x128xf32> to vector<8x128xf32>
    %101 = arith.addf %96, %100 : vector<8x128xf32>
    %102 = arith.mulf %93, %101 : vector<8x128xf32>
    %103 = arith.addf %99, %102 : vector<8x128xf32>
    %104 = math.tanh %103 : vector<8x128xf32>
    %cst_54 = arith.constant 1.000000e+00 : f32
    %105 = vector.broadcast %cst_54 : f32 to vector<8x128xf32>
    %106 = arith.subf %105, %94 : vector<8x128xf32>
    %107 = arith.mulf %106, %104 : vector<8x128xf32>
    %108 = arith.mulf %94, %76 : vector<8x128xf32>
    %109 = arith.addf %107, %108 : vector<8x128xf32>
    %110 = arith.index_cast %c2_i32 : i32 to index
    %c0_55 = arith.constant 0 : index
    %c0_56 = arith.constant 0 : index
    %111 = vector.load %arg9[%110, %c0_55, %c0_56] : memref<8x8x128xf32, #tpu.memory_space<vmem>>, vector<1x8x128xf32>
    %112 = vector.shape_cast %111 : vector<1x8x128xf32> to vector<8x128xf32>
    %113 = vector.shape_cast %109 : vector<8x128xf32> to vector<1x8x128xf32>
    tpu.vector_store %arg9[%110, %c0_55, %c0_56], %113 {strides = array<i32>} : memref<8x8x128xf32, #tpu.memory_space<vmem>>, vector<1x8x128xf32>,
    %c3_i32 = arith.constant 3 : i32
    %114 = arith.truncf %109 : vector<8x128xf32> to vector<8x128xbf16>
    %115 = arith.index_cast %c3_i32 : i32 to index
    %c0_57 = arith.constant 0 : index
    %c0_58 = arith.constant 0 : index
    %116 = vector.load %arg11[%115, %c0_57, %c0_58] : memref<8x8x384xf32, #tpu.memory_space<vmem>>, vector<1x8x256xf32>
    %117 = vector.shape_cast %116 : vector<1x8x256xf32> to vector<8x256xf32>
    %c0_59 = arith.constant 0 : index
    %c0_60 = arith.constant 0 : index
    %118 = vector.load %arg5[%c0_59, %c0_60] : memref<128x256xbf16, #tpu.memory_space<vmem>>, vector<128x256xbf16>
    %cst_61 = arith.constant dense<0.000000e+00> : vector<8x256xf32>
    %119 = tpu.matmul %114, %118, %cst_61 {dimension_numbers = #tpu.dot_dimension_numbers<[1], [0], [0], [1], [0, 0, 1, 1], [], []>} : vector<8x128xbf16>, vector<128x256xbf16>, vector<8x256xf32> -> vector<8x256xf32>
    %120 = arith.addf %117, %119 : vector<8x256xf32>
    %121 = arith.negf %120 : vector<8x256xf32>
    %122 = math.exp %121 : vector<8x256xf32>
    %cst_62 = arith.constant 1.000000e+00 : f32
    %123 = vector.broadcast %cst_62 : f32 to vector<8x256xf32>
    %124 = arith.addf %123, %122 : vector<8x256xf32>
    %125 = arith.divf %123, %124 : vector<8x256xf32>
    %126 = vector.extract_strided_slice %125 {offsets = [0, 0], sizes = [8, 128], strides = [1, 1]} : vector<8x256xf32> to vector<8x128xf32>
    %127 = vector.extract_strided_slice %125 {offsets = [0, 128], sizes = [8, 128], strides = [1, 1]} : vector<8x256xf32> to vector<8x128xf32>
    %c0_63 = arith.constant 0 : index
    %c0_64 = arith.constant 0 : index
    %128 = vector.load %arg6[%c0_63, %c0_64] : memref<128x128xbf16, #tpu.memory_space<vmem>>, vector<128x128xbf16>
    %cst_65 = arith.constant dense<0.000000e+00> : vector<8x128xf32>
    %129 = tpu.matmul %114, %128, %cst_65 {dimension_numbers = #tpu.dot_dimension_numbers<[1], [0], [0], [1], [0, 0, 1, 1], [], []>} : vector<8x128xbf16>, vector<128x128xbf16>, vector<8x128xf32> -> vector<8x128xf32>
    %130 = arith.index_cast %c3_i32 : i32 to index
    %c0_66 = arith.constant 0 : index
    %c256_67 = arith.constant 256 : index
    %131 = vector.load %arg11[%130, %c0_66, %c256_67] : memref<8x8x384xf32, #tpu.memory_space<vmem>>, vector<1x8x128xf32>
    %132 = vector.shape_cast %131 : vector<1x8x128xf32> to vector<8x128xf32>
    %133 = vector.broadcast %13 : vector<1x128xf32> to vector<8x128xf32>
    %134 = arith.addf %129, %133 : vector<8x128xf32>
    %135 = arith.mulf %126, %134 : vector<8x128xf32>
    %136 = arith.addf %132, %135 : vector<8x128xf32>
    %137 = math.tanh %136 : vector<8x128xf32>
    %cst_68 = arith.constant 1.000000e+00 : f32
    %138 = vector.broadcast %cst_68 : f32 to vector<8x128xf32>
    %139 = arith.subf %138, %127 : vector<8x128xf32>
    %140 = arith.mulf %139, %137 : vector<8x128xf32>
    %141 = arith.mulf %127, %109 : vector<8x128xf32>
    %142 = arith.addf %140, %141 : vector<8x128xf32>
    %143 = arith.index_cast %c3_i32 : i32 to index
    %c0_69 = arith.constant 0 : index
    %c0_70 = arith.constant 0 : index
    %144 = vector.load %arg9[%143, %c0_69, %c0_70] : memref<8x8x128xf32, #tpu.memory_space<vmem>>, vector<1x8x128xf32>
    %145 = vector.shape_cast %144 : vector<1x8x128xf32> to vector<8x128xf32>
    %146 = vector.shape_cast %142 : vector<8x128xf32> to vector<1x8x128xf32>
    tpu.vector_store %arg9[%143, %c0_69, %c0_70], %146 {strides = array<i32>} : memref<8x8x128xf32, #tpu.memory_space<vmem>>, vector<1x8x128xf32>,
    %c4_i32 = arith.constant 4 : i32
    %147 = arith.truncf %142 : vector<8x128xf32> to vector<8x128xbf16>
    %148 = arith.index_cast %c4_i32 : i32 to index
    %c0_71 = arith.constant 0 : index
    %c0_72 = arith.constant 0 : index
    %149 = vector.load %arg11[%148, %c0_71, %c0_72] : memref<8x8x384xf32, #tpu.memory_space<vmem>>, vector<1x8x256xf32>
    %150 = vector.shape_cast %149 : vector<1x8x256xf32> to vector<8x256xf32>
    %c0_73 = arith.constant 0 : index
    %c0_74 = arith.constant 0 : index
    %151 = vector.load %arg5[%c0_73, %c0_74] : memref<128x256xbf16, #tpu.memory_space<vmem>>, vector<128x256xbf16>
    %cst_75 = arith.constant dense<0.000000e+00> : vector<8x256xf32>
    %152 = tpu.matmul %147, %151, %cst_75 {dimension_numbers = #tpu.dot_dimension_numbers<[1], [0], [0], [1], [0, 0, 1, 1], [], []>} : vector<8x128xbf16>, vector<128x256xbf16>, vector<8x256xf32> -> vector<8x256xf32>
    %153 = arith.addf %150, %152 : vector<8x256xf32>
    %154 = arith.negf %153 : vector<8x256xf32>
    %155 = math.exp %154 : vector<8x256xf32>
    %cst_76 = arith.constant 1.000000e+00 : f32
    %156 = vector.broadcast %cst_76 : f32 to vector<8x256xf32>
    %157 = arith.addf %156, %155 : vector<8x256xf32>
    %158 = arith.divf %156, %157 : vector<8x256xf32>
    %159 = vector.extract_strided_slice %158 {offsets = [0, 0], sizes = [8, 128], strides = [1, 1]} : vector<8x256xf32> to vector<8x128xf32>
    %160 = vector.extract_strided_slice %158 {offsets = [0, 128], sizes = [8, 128], strides = [1, 1]} : vector<8x256xf32> to vector<8x128xf32>
    %c0_77 = arith.constant 0 : index
    %c0_78 = arith.constant 0 : index
    %161 = vector.load %arg6[%c0_77, %c0_78] : memref<128x128xbf16, #tpu.memory_space<vmem>>, vector<128x128xbf16>
    %cst_79 = arith.constant dense<0.000000e+00> : vector<8x128xf32>
    %162 = tpu.matmul %147, %161, %cst_79 {dimension_numbers = #tpu.dot_dimension_numbers<[1], [0], [0], [1], [0, 0, 1, 1], [], []>} : vector<8x128xbf16>, vector<128x128xbf16>, vector<8x128xf32> -> vector<8x128xf32>
    %163 = arith.index_cast %c4_i32 : i32 to index
    %c0_80 = arith.constant 0 : index
    %c256_81 = arith.constant 256 : index
    %164 = vector.load %arg11[%163, %c0_80, %c256_81] : memref<8x8x384xf32, #tpu.memory_space<vmem>>, vector<1x8x128xf32>
    %165 = vector.shape_cast %164 : vector<1x8x128xf32> to vector<8x128xf32>
    %166 = vector.broadcast %13 : vector<1x128xf32> to vector<8x128xf32>
    %167 = arith.addf %162, %166 : vector<8x128xf32>
    %168 = arith.mulf %159, %167 : vector<8x128xf32>
    %169 = arith.addf %165, %168 : vector<8x128xf32>
    %170 = math.tanh %169 : vector<8x128xf32>
    %cst_82 = arith.constant 1.000000e+00 : f32
    %171 = vector.broadcast %cst_82 : f32 to vector<8x128xf32>
    %172 = arith.subf %171, %160 : vector<8x128xf32>
    %173 = arith.mulf %172, %170 : vector<8x128xf32>
    %174 = arith.mulf %160, %142 : vector<8x128xf32>
    %175 = arith.addf %173, %174 : vector<8x128xf32>
    %176 = arith.index_cast %c4_i32 : i32 to index
    %c0_83 = arith.constant 0 : index
    %c0_84 = arith.constant 0 : index
    %177 = vector.load %arg9[%176, %c0_83, %c0_84] : memref<8x8x128xf32, #tpu.memory_space<vmem>>, vector<1x8x128xf32>
    %178 = vector.shape_cast %177 : vector<1x8x128xf32> to vector<8x128xf32>
    %179 = vector.shape_cast %175 : vector<8x128xf32> to vector<1x8x128xf32>
    tpu.vector_store %arg9[%176, %c0_83, %c0_84], %179 {strides = array<i32>} : memref<8x8x128xf32, #tpu.memory_space<vmem>>, vector<1x8x128xf32>,
    %c5_i32 = arith.constant 5 : i32
    %180 = arith.truncf %175 : vector<8x128xf32> to vector<8x128xbf16>
    %181 = arith.index_cast %c5_i32 : i32 to index
    %c0_85 = arith.constant 0 : index
    %c0_86 = arith.constant 0 : index
    %182 = vector.load %arg11[%181, %c0_85, %c0_86] : memref<8x8x384xf32, #tpu.memory_space<vmem>>, vector<1x8x256xf32>
    %183 = vector.shape_cast %182 : vector<1x8x256xf32> to vector<8x256xf32>
    %c0_87 = arith.constant 0 : index
    %c0_88 = arith.constant 0 : index
    %184 = vector.load %arg5[%c0_87, %c0_88] : memref<128x256xbf16, #tpu.memory_space<vmem>>, vector<128x256xbf16>
    %cst_89 = arith.constant dense<0.000000e+00> : vector<8x256xf32>
    %185 = tpu.matmul %180, %184, %cst_89 {dimension_numbers = #tpu.dot_dimension_numbers<[1], [0], [0], [1], [0, 0, 1, 1], [], []>} : vector<8x128xbf16>, vector<128x256xbf16>, vector<8x256xf32> -> vector<8x256xf32>
    %186 = arith.addf %183, %185 : vector<8x256xf32>
    %187 = arith.negf %186 : vector<8x256xf32>
    %188 = math.exp %187 : vector<8x256xf32>
    %cst_90 = arith.constant 1.000000e+00 : f32
    %189 = vector.broadcast %cst_90 : f32 to vector<8x256xf32>
    %190 = arith.addf %189, %188 : vector<8x256xf32>
    %191 = arith.divf %189, %190 : vector<8x256xf32>
    %192 = vector.extract_strided_slice %191 {offsets = [0, 0], sizes = [8, 128], strides = [1, 1]} : vector<8x256xf32> to vector<8x128xf32>
    %193 = vector.extract_strided_slice %191 {offsets = [0, 128], sizes = [8, 128], strides = [1, 1]} : vector<8x256xf32> to vector<8x128xf32>
    %c0_91 = arith.constant 0 : index
    %c0_92 = arith.constant 0 : index
    %194 = vector.load %arg6[%c0_91, %c0_92] : memref<128x128xbf16, #tpu.memory_space<vmem>>, vector<128x128xbf16>
    %cst_93 = arith.constant dense<0.000000e+00> : vector<8x128xf32>
    %195 = tpu.matmul %180, %194, %cst_93 {dimension_numbers = #tpu.dot_dimension_numbers<[1], [0], [0], [1], [0, 0, 1, 1], [], []>} : vector<8x128xbf16>, vector<128x128xbf16>, vector<8x128xf32> -> vector<8x128xf32>
    %196 = arith.index_cast %c5_i32 : i32 to index
    %c0_94 = arith.constant 0 : index
    %c256_95 = arith.constant 256 : index
    %197 = vector.load %arg11[%196, %c0_94, %c256_95] : memref<8x8x384xf32, #tpu.memory_space<vmem>>, vector<1x8x128xf32>
    %198 = vector.shape_cast %197 : vector<1x8x128xf32> to vector<8x128xf32>
    %199 = vector.broadcast %13 : vector<1x128xf32> to vector<8x128xf32>
    %200 = arith.addf %195, %199 : vector<8x128xf32>
    %201 = arith.mulf %192, %200 : vector<8x128xf32>
    %202 = arith.addf %198, %201 : vector<8x128xf32>
    %203 = math.tanh %202 : vector<8x128xf32>
    %cst_96 = arith.constant 1.000000e+00 : f32
    %204 = vector.broadcast %cst_96 : f32 to vector<8x128xf32>
    %205 = arith.subf %204, %193 : vector<8x128xf32>
    %206 = arith.mulf %205, %203 : vector<8x128xf32>
    %207 = arith.mulf %193, %175 : vector<8x128xf32>
    %208 = arith.addf %206, %207 : vector<8x128xf32>
    %209 = arith.index_cast %c5_i32 : i32 to index
    %c0_97 = arith.constant 0 : index
    %c0_98 = arith.constant 0 : index
    %210 = vector.load %arg9[%209, %c0_97, %c0_98] : memref<8x8x128xf32, #tpu.memory_space<vmem>>, vector<1x8x128xf32>
    %211 = vector.shape_cast %210 : vector<1x8x128xf32> to vector<8x128xf32>
    %212 = vector.shape_cast %208 : vector<8x128xf32> to vector<1x8x128xf32>
    tpu.vector_store %arg9[%209, %c0_97, %c0_98], %212 {strides = array<i32>} : memref<8x8x128xf32, #tpu.memory_space<vmem>>, vector<1x8x128xf32>,
    %c6_i32 = arith.constant 6 : i32
    %213 = arith.truncf %208 : vector<8x128xf32> to vector<8x128xbf16>
    %214 = arith.index_cast %c6_i32 : i32 to index
    %c0_99 = arith.constant 0 : index
    %c0_100 = arith.constant 0 : index
    %215 = vector.load %arg11[%214, %c0_99, %c0_100] : memref<8x8x384xf32, #tpu.memory_space<vmem>>, vector<1x8x256xf32>
    %216 = vector.shape_cast %215 : vector<1x8x256xf32> to vector<8x256xf32>
    %c0_101 = arith.constant 0 : index
    %c0_102 = arith.constant 0 : index
    %217 = vector.load %arg5[%c0_101, %c0_102] : memref<128x256xbf16, #tpu.memory_space<vmem>>, vector<128x256xbf16>
    %cst_103 = arith.constant dense<0.000000e+00> : vector<8x256xf32>
    %218 = tpu.matmul %213, %217, %cst_103 {dimension_numbers = #tpu.dot_dimension_numbers<[1], [0], [0], [1], [0, 0, 1, 1], [], []>} : vector<8x128xbf16>, vector<128x256xbf16>, vector<8x256xf32> -> vector<8x256xf32>
    %219 = arith.addf %216, %218 : vector<8x256xf32>
    %220 = arith.negf %219 : vector<8x256xf32>
    %221 = math.exp %220 : vector<8x256xf32>
    %cst_104 = arith.constant 1.000000e+00 : f32
    %222 = vector.broadcast %cst_104 : f32 to vector<8x256xf32>
    %223 = arith.addf %222, %221 : vector<8x256xf32>
    %224 = arith.divf %222, %223 : vector<8x256xf32>
    %225 = vector.extract_strided_slice %224 {offsets = [0, 0], sizes = [8, 128], strides = [1, 1]} : vector<8x256xf32> to vector<8x128xf32>
    %226 = vector.extract_strided_slice %224 {offsets = [0, 128], sizes = [8, 128], strides = [1, 1]} : vector<8x256xf32> to vector<8x128xf32>
    %c0_105 = arith.constant 0 : index
    %c0_106 = arith.constant 0 : index
    %227 = vector.load %arg6[%c0_105, %c0_106] : memref<128x128xbf16, #tpu.memory_space<vmem>>, vector<128x128xbf16>
    %cst_107 = arith.constant dense<0.000000e+00> : vector<8x128xf32>
    %228 = tpu.matmul %213, %227, %cst_107 {dimension_numbers = #tpu.dot_dimension_numbers<[1], [0], [0], [1], [0, 0, 1, 1], [], []>} : vector<8x128xbf16>, vector<128x128xbf16>, vector<8x128xf32> -> vector<8x128xf32>
    %229 = arith.index_cast %c6_i32 : i32 to index
    %c0_108 = arith.constant 0 : index
    %c256_109 = arith.constant 256 : index
    %230 = vector.load %arg11[%229, %c0_108, %c256_109] : memref<8x8x384xf32, #tpu.memory_space<vmem>>, vector<1x8x128xf32>
    %231 = vector.shape_cast %230 : vector<1x8x128xf32> to vector<8x128xf32>
    %232 = vector.broadcast %13 : vector<1x128xf32> to vector<8x128xf32>
    %233 = arith.addf %228, %232 : vector<8x128xf32>
    %234 = arith.mulf %225, %233 : vector<8x128xf32>
    %235 = arith.addf %231, %234 : vector<8x128xf32>
    %236 = math.tanh %235 : vector<8x128xf32>
    %cst_110 = arith.constant 1.000000e+00 : f32
    %237 = vector.broadcast %cst_110 : f32 to vector<8x128xf32>
    %238 = arith.subf %237, %226 : vector<8x128xf32>
    %239 = arith.mulf %238, %236 : vector<8x128xf32>
    %240 = arith.mulf %226, %208 : vector<8x128xf32>
    %241 = arith.addf %239, %240 : vector<8x128xf32>
    %242 = arith.index_cast %c6_i32 : i32 to index
    %c0_111 = arith.constant 0 : index
    %c0_112 = arith.constant 0 : index
    %243 = vector.load %arg9[%242, %c0_111, %c0_112] : memref<8x8x128xf32, #tpu.memory_space<vmem>>, vector<1x8x128xf32>
    %244 = vector.shape_cast %243 : vector<1x8x128xf32> to vector<8x128xf32>
    %245 = vector.shape_cast %241 : vector<8x128xf32> to vector<1x8x128xf32>
    tpu.vector_store %arg9[%242, %c0_111, %c0_112], %245 {strides = array<i32>} : memref<8x8x128xf32, #tpu.memory_space<vmem>>, vector<1x8x128xf32>,
    %c7_i32 = arith.constant 7 : i32
    %246 = arith.truncf %241 : vector<8x128xf32> to vector<8x128xbf16>
    %247 = arith.index_cast %c7_i32 : i32 to index
    %c0_113 = arith.constant 0 : index
    %c0_114 = arith.constant 0 : index
    %248 = vector.load %arg11[%247, %c0_113, %c0_114] : memref<8x8x384xf32, #tpu.memory_space<vmem>>, vector<1x8x256xf32>
    %249 = vector.shape_cast %248 : vector<1x8x256xf32> to vector<8x256xf32>
    %c0_115 = arith.constant 0 : index
    %c0_116 = arith.constant 0 : index
    %250 = vector.load %arg5[%c0_115, %c0_116] : memref<128x256xbf16, #tpu.memory_space<vmem>>, vector<128x256xbf16>
    %cst_117 = arith.constant dense<0.000000e+00> : vector<8x256xf32>
    %251 = tpu.matmul %246, %250, %cst_117 {dimension_numbers = #tpu.dot_dimension_numbers<[1], [0], [0], [1], [0, 0, 1, 1], [], []>} : vector<8x128xbf16>, vector<128x256xbf16>, vector<8x256xf32> -> vector<8x256xf32>
    %252 = arith.addf %249, %251 : vector<8x256xf32>
    %253 = arith.negf %252 : vector<8x256xf32>
    %254 = math.exp %253 : vector<8x256xf32>
    %cst_118 = arith.constant 1.000000e+00 : f32
    %255 = vector.broadcast %cst_118 : f32 to vector<8x256xf32>
    %256 = arith.addf %255, %254 : vector<8x256xf32>
    %257 = arith.divf %255, %256 : vector<8x256xf32>
    %258 = vector.extract_strided_slice %257 {offsets = [0, 0], sizes = [8, 128], strides = [1, 1]} : vector<8x256xf32> to vector<8x128xf32>
    %259 = vector.extract_strided_slice %257 {offsets = [0, 128], sizes = [8, 128], strides = [1, 1]} : vector<8x256xf32> to vector<8x128xf32>
    %c0_119 = arith.constant 0 : index
    %c0_120 = arith.constant 0 : index
    %260 = vector.load %arg6[%c0_119, %c0_120] : memref<128x128xbf16, #tpu.memory_space<vmem>>, vector<128x128xbf16>
    %cst_121 = arith.constant dense<0.000000e+00> : vector<8x128xf32>
    %261 = tpu.matmul %246, %260, %cst_121 {dimension_numbers = #tpu.dot_dimension_numbers<[1], [0], [0], [1], [0, 0, 1, 1], [], []>} : vector<8x128xbf16>, vector<128x128xbf16>, vector<8x128xf32> -> vector<8x128xf32>
    %262 = arith.index_cast %c7_i32 : i32 to index
    %c0_122 = arith.constant 0 : index
    %c256_123 = arith.constant 256 : index
    %263 = vector.load %arg11[%262, %c0_122, %c256_123] : memref<8x8x384xf32, #tpu.memory_space<vmem>>, vector<1x8x128xf32>
    %264 = vector.shape_cast %263 : vector<1x8x128xf32> to vector<8x128xf32>
    %265 = vector.broadcast %13 : vector<1x128xf32> to vector<8x128xf32>
    %266 = arith.addf %261, %265 : vector<8x128xf32>
    %267 = arith.mulf %258, %266 : vector<8x128xf32>
    %268 = arith.addf %264, %267 : vector<8x128xf32>
    %269 = math.tanh %268 : vector<8x128xf32>
    %cst_124 = arith.constant 1.000000e+00 : f32
    %270 = vector.broadcast %cst_124 : f32 to vector<8x128xf32>
    %271 = arith.subf %270, %259 : vector<8x128xf32>
    %272 = arith.mulf %271, %269 : vector<8x128xf32>
    %273 = arith.mulf %259, %241 : vector<8x128xf32>
    %274 = arith.addf %272, %273 : vector<8x128xf32>
    %275 = arith.index_cast %c7_i32 : i32 to index
    %c0_125 = arith.constant 0 : index
    %c0_126 = arith.constant 0 : index
    %276 = vector.load %arg9[%275, %c0_125, %c0_126] : memref<8x8x128xf32, #tpu.memory_space<vmem>>, vector<1x8x128xf32>
    %277 = vector.shape_cast %276 : vector<1x8x128xf32> to vector<8x128xf32>
    %278 = vector.shape_cast %274 : vector<8x128xf32> to vector<1x8x128xf32>
    tpu.vector_store %arg9[%275, %c0_125, %c0_126], %278 {strides = array<i32>} : memref<8x8x128xf32, #tpu.memory_space<vmem>>, vector<1x8x128xf32>,
    %c8_i32 = arith.constant 8 : i32
    %c0_127 = arith.constant 0 : index
    %c0_128 = arith.constant 0 : index
    %279 = vector.load %arg10[%c0_127, %c0_128] : memref<8x128xf32, #tpu.memory_space<vmem>>, vector<8x128xf32>
    tpu.vector_store %arg10[%c0_127, %c0_128], %274 {strides = array<i32>} : memref<8x128xf32, #tpu.memory_space<vmem>>, vector<8x128xf32>,
    return
  }
  func.func @transform_0(%arg0: i32, %arg1: i32) -> (i32, i32, i32) {
    %c0_i32 = arith.constant 0 : i32
    %c0_i32_0 = arith.constant 0 : i32
    return %arg1, %arg0, %c0_i32 : i32, i32, i32
  }
  func.func @transform_1(%arg0: i32, %arg1: i32) -> (i32, i32) {
    %c0_i32 = arith.constant 0 : i32
    %c0_i32_0 = arith.constant 0 : i32
    return %arg0, %c0_i32 : i32, i32
  }
  func.func @transform_2(%arg0: i32, %arg1: i32) -> (i32, i32) {
    %c0_i32 = arith.constant 0 : i32
    %c0_i32_0 = arith.constant 0 : i32
    %c0_i32_1 = arith.constant 0 : i32
    return %c0_i32, %c0_i32_0 : i32, i32
  }
  func.func @transform_3(%arg0: i32, %arg1: i32) -> (i32, i32) {
    %c0_i32 = arith.constant 0 : i32
    %c0_i32_0 = arith.constant 0 : i32
    %c0_i32_1 = arith.constant 0 : i32
    return %c0_i32, %c0_i32_0 : i32, i32
  }
  func.func @transform_4(%arg0: i32, %arg1: i32) -> (i32, i32) {
    %c0_i32 = arith.constant 0 : i32
    %c0_i32_0 = arith.constant 0 : i32
    %c0_i32_1 = arith.constant 0 : i32
    return %c0_i32, %c0_i32_0 : i32, i32
  }
  func.func @transform_5(%arg0: i32, %arg1: i32) -> (i32, i32, i32) {
    %c0_i32 = arith.constant 0 : i32
    %c0_i32_0 = arith.constant 0 : i32
    %c0_i32_1 = arith.constant 0 : i32
    %c0_i32_2 = arith.constant 0 : i32
    return %c0_i32, %c0_i32_0, %c0_i32_1 : i32, i32, i32
  }
  func.func @transform_6(%arg0: i32, %arg1: i32) -> (i32, i32) {
    %c0_i32 = arith.constant 0 : i32
    %c0_i32_0 = arith.constant 0 : i32
    %c0_i32_1 = arith.constant 0 : i32
    return %c0_i32, %c0_i32_0 : i32, i32
  }
  func.func @transform_7(%arg0: i32, %arg1: i32) -> (i32, i32, i32) {
    %c0_i32 = arith.constant 0 : i32
    %c0_i32_0 = arith.constant 0 : i32
    return %arg1, %arg0, %c0_i32 : i32, i32, i32
  }
  func.func @transform_8(%arg0: i32, %arg1: i32) -> (i32, i32) {
    %c0_i32 = arith.constant 0 : i32
    %c0_i32_0 = arith.constant 0 : i32
    return %arg0, %c0_i32 : i32, i32
  }
}

</mosaic_0001>

<llo_original>
// kernel: decoder_rnn_forward.1
$region0: #{decoder_rnn_forward.1}
  #allocation0 [shape = 'u32[]', space=smem, size = 0x4, offset = 0x4, fixed_abs, tag = 'smem constant byte address 0x4 - core index']
  #allocation1 [shape = 'u32[144,128]{1,0:T(1,128)}', space=vmem, size = 0x12000, scoped, tag = 'internal scratch']
  #allocation2 [shape = 'f32[8,8,384]{2,1,0:T(8,128)}', space=vmem, size = 0x18000, scoped, tag = 'scratch operand']
  %s0 = inlined_call_operand.vmem [shape: f32[8,8,16], index: 0, kind: input, shape index: {}]
  %s1 = inlined_call_operand.vmem [shape: f32[8,128], index: 1, kind: input, shape index: {}]
  %s2 = inlined_call_operand.vmem [shape: bf16[16,384], index: 2, kind: input, shape index: {}]
  %s3 = inlined_call_operand.vmem [shape: bf16[128,256], index: 3, kind: input, shape index: {}]
  %s4 = inlined_call_operand.vmem [shape: bf16[128,128], index: 4, kind: input, shape index: {}]
  %s5 = inlined_call_operand.vmem [shape: f32[1,1,384], index: 5, kind: input, shape index: {}]
  %s6 = inlined_call_operand.vmem [shape: f32[1,128], index: 6, kind: input, shape index: {}]
  %s7 = inlined_call_operand.vmem [shape: f32[8,8,128], index: 7, kind: output, shape index: {0}]
  %s8 = inlined_call_operand.vmem [shape: f32[8,128], index: 8, kind: output, shape index: {1}]
  %9 = xla_tuple %s7, %s8
  %s10 = sld [smem:[#allocation0]]
  $region50: #{decoder_rnn_forward.1} parent=0
    _
  %s12 = ssub.s32 1, %s10
  %s13 = scalar_select 0, %s12, %s10
  // Predicated region
  $region2: #{decoder_rnn_forward.1} parent=0 // pred_check
    _
  $region3: #{decoder_rnn_forward.1} parent=0 // pred_check_branch
    %15 = sbr.rel (0) target = $region5
  $region4: #{decoder_rnn_forward.1} parent=0 // pred_region
    _
  $region5: #{decoder_rnn_forward.1} parent=0 // pred_fallthru
    _
  // Predicated region
  $region6: #{decoder_rnn_forward.1} parent=0 // pred_check
    _
  $region7: #{decoder_rnn_forward.1} parent=0 // pred_check_branch
    %17 = sbr.rel (0) target = $region9
  $region8: #{decoder_rnn_forward.1} parent=0 // pred_region
    _
  $region9: #{decoder_rnn_forward.1} parent=0 // pred_fallthru
    _
  // Predicated region
  $region10: #{decoder_rnn_forward.1} parent=0 // pred_check
    _
  $region11: #{decoder_rnn_forward.1} parent=0 // pred_check_branch
    %19 = sbr.rel (0) target = $region13
  $region12: #{decoder_rnn_forward.1} parent=0 // pred_region
    _
  $region13: #{decoder_rnn_forward.1} parent=0 // pred_fallthru
    _
  // Predicated region
  $region14: #{decoder_rnn_forward.1} parent=0 // pred_check
    _
  $region15: #{decoder_rnn_forward.1} parent=0 // pred_check_branch
    %21 = sbr.rel (0) target = $region17
  $region16: #{decoder_rnn_forward.1} parent=0 // pred_region
    _
  $region17: #{decoder_rnn_forward.1} parent=0 // pred_fallthru
    _
  // Predicated region
  $region18: #{decoder_rnn_forward.1} parent=0 // pred_check
    _
  $region19: #{decoder_rnn_forward.1} parent=0 // pred_check_branch
    %23 = sbr.rel (0) target = $region21
  $region20: #{decoder_rnn_forward.1} parent=0 // pred_region
    _
  $region21: #{decoder_rnn_forward.1} parent=0 // pred_fallthru
    _
  // Predicated region
  $region22: #{decoder_rnn_forward.1} parent=0 // pred_check
    _
  $region23: #{decoder_rnn_forward.1} parent=0 // pred_check_branch
    %25 = sbr.rel (0) target = $region25
  $region24: #{decoder_rnn_forward.1} parent=0 // pred_region
    _
  $region25: #{decoder_rnn_forward.1} parent=0 // pred_fallthru
    _
  // Predicated region
  $region26: #{decoder_rnn_forward.1} parent=0 // pred_check
    _
  $region27: #{decoder_rnn_forward.1} parent=0 // pred_check_branch
    %27 = sbr.rel (0) target = $region29
  $region28: #{decoder_rnn_forward.1} parent=0 // pred_region
    _
  $region29: #{decoder_rnn_forward.1} parent=0 // pred_fallthru
    _
  %p29 = scmp.eq.s32.totalorder 0, 0
  // Predicated region
  $region30: #{decoder_rnn_forward.1} parent=0 // pred_check
    %p30 = pneg %p29
  $region31: #{decoder_rnn_forward.1} parent=0 // pred_check_branch
    %32 = sbr.rel (%p30) target = $region33
  $region32: #{decoder_rnn_forward.1} parent=0 // pred_region
    %v33 = vld [vmem:[%s1] sm:$0xff]
    %34 = vst [vmem:[%s8] sm:$0xff] %v33
  $region33: #{decoder_rnn_forward.1} parent=0 // pred_fallthru
    _
  %v35 = vld [vmem:[%s0] sm:$0xff]
  %v36 = vld [vmem:[%s0 + $0x8] sm:$0xff]
  %v37 = vld [vmem:[%s0 + $0x10] sm:$0xff]
  %v38 = vld [vmem:[%s0 + $0x18] sm:$0xff]
  %v39 = vld [vmem:[%s0 + $0x20] sm:$0xff]
  %v40 = vld [vmem:[%s0 + $0x28] sm:$0xff]
  %v41 = vld [vmem:[%s0 + $0x30] sm:$0xff]
  %v42 = vld [vmem:[%s0 + $0x38] sm:$0xff]
  %v43 = vpack.c.bf16 %v36, %v35
  %v44 = vpack.c.bf16 %v38, %v37
  %v45 = vpack.c.bf16 %v40, %v39
  %v46 = vpack.c.bf16 %v42, %v41
  %v47 = vld [vmem:[%s2] sm:$0xff]
  %v48 = vld [vmem:[%s2 + $0x8] sm:$0xf]
  %v49 = vld [vmem:[%s2 + $0xc] sm:$0xff]
  %v50 = vld [vmem:[%s2 + $0x14] sm:$0xf]
  %v55 = vunpack.c.l.b16 %v47
  %v56 = vunpack.c.h.b16 %v47
  %v57 = vunpack.c.l.b16 %v48
  %v58 = vunpack.c.l.b16 %v49
  %v59 = vunpack.c.h.b16 %v49
  %v60 = vunpack.c.l.b16 %v50
  %v61 = vpack.c.b16 %v58, %v55
  %v62 = vpack.c.b16 %v59, %v56
  %v63 = vpack.c.b16 %v60, %v57
  %vm67 = vcmask 130048
  %v69 = vsel %vm67, %v43, 0
  %v72 = vsel %vm67, %v44, 0
  %v75 = vsel %vm67, %v45, 0
  %v78 = vsel %vm67, %v46, 0
  %80 = vmatprep.subr.bf16.mxu0 %v62
  %81 = vmatpush1.bf16.msra.mxu0 %v61
  %82 = vmatprep.subr.bf16.mxu0 0
  %83 = vmatpush1.bf16.msra.mxu0 0
  %84 = vmatprep.subr.bf16.mxu0 0
  %85 = vmatpush1.bf16.msra.mxu0 0
  %86 = vmatprep.subr.bf16.mxu0 0
  %87 = vmatpush1.bf16.msra.mxu0 0
  %88 = vmatprep.subr.bf16.mxu0 0
  %89 = vmatpush1.bf16.msra.mxu0 0
  %90 = vmatprep.subr.bf16.mxu0 0
  %91 = vmatpush1.bf16.msra.mxu0 0
  %92 = vmatprep.subr.bf16.mxu0 0
  %93 = vmatpush1.bf16.msra.mxu0 0
  %94 = vmatprep.subr.bf16.mxu0 0
  %95 = vmatpush1.bf16.msra.mxu0 0
  %96 = vmatprep.subr.bf16.mxu0 0
  %97 = vmatpush1.bf16.msra.mxu0 0
  %98 = vmatprep.subr.bf16.mxu0 0
  %99 = vmatpush1.bf16.msra.mxu0 0
  %100 = vmatprep.subr.bf16.mxu0 0
  %101 = vmatpush1.bf16.msra.mxu0 0
  %102 = vmatprep.subr.bf16.mxu0 0
  %103 = vmatpush1.bf16.msra.mxu0 0
  %104 = vmatprep.subr.bf16.mxu0 0
  %105 = vmatpush1.bf16.msra.mxu0 0
  %106 = vmatprep.subr.bf16.mxu0 0
  %107 = vmatpush1.bf16.msra.mxu0 0
  %108 = vmatprep.subr.bf16.mxu0 0
  %109 = vmatpush1.bf16.msra.mxu0 0
  %110 = vmatprep.subr.bf16.mxu0 0
  %111 = vmatpush1.bf16.msra.mxu0 0
  %112 = vmatprep.mubr.bf16.mxu0 0
  %113 = vmatmul.mubr.bf16.gmra.mrb[0].mxu0 %v69
  %v114 = vpop.f32.mrb[0].mxu0
  %v115 = vadd.f32 0.0, %v114
  %v116 = vpop.f32.mrb[0].mxu0
  %v117 = vadd.f32 0.0, %v116
  %v118 = vpop.f32.mrb[0].mxu0
  %v119 = vadd.f32 0.0, %v118
  %v120 = vpop.f32.mrb[0].mxu0
  %v121 = vadd.f32 0.0, %v120
  %122 = vmatprep.mubr.bf16.mxu0 0
  %123 = vmatmul.mubr.bf16.gmra.mrb[0].mxu0 %v72
  %v124 = vpop.f32.mrb[0].mxu0
  %v125 = vadd.f32 0.0, %v124
  %v126 = vpop.f32.mrb[0].mxu0
  %v127 = vadd.f32 0.0, %v126
  %v128 = vpop.f32.mrb[0].mxu0
  %v129 = vadd.f32 0.0, %v128
  %v130 = vpop.f32.mrb[0].mxu0
  %v131 = vadd.f32 0.0, %v130
  %132 = vmatprep.mubr.bf16.mxu0 0
  %133 = vmatmul.mubr.bf16.gmra.mrb[0].mxu0 %v75
  %v134 = vpop.f32.mrb[0].mxu0
  %v135 = vadd.f32 0.0, %v134
  %v136 = vpop.f32.mrb[0].mxu0
  %v137 = vadd.f32 0.0, %v136
  %v138 = vpop.f32.mrb[0].mxu0
  %v139 = vadd.f32 0.0, %v138
  %v140 = vpop.f32.mrb[0].mxu0
  %v141 = vadd.f32 0.0, %v140
  %142 = vmatprep.mubr.bf16.mxu0 0
  %143 = vmatmul.mubr.bf16.gmra.mrb[0].mxu0 %v78
  %v144 = vpop.f32.mrb[0].mxu0
  %v145 = vadd.f32 0.0, %v144
  %v146 = vpop.f32.mrb[0].mxu0
  %v147 = vadd.f32 0.0, %v146
  %v148 = vpop.f32.mrb[0].mxu0
  %v149 = vadd.f32 0.0, %v148
  %v150 = vpop.f32.mrb[0].mxu0
  %v151 = vadd.f32 0.0, %v150
  %152 = vdwg.mxu0
  %153 = vmatprep.subr.bf16.mxu0 0
  %154 = vmatpush1.bf16.msra.mxu0 %v63
  %155 = vmatprep.subr.bf16.mxu0 0
  %156 = vmatpush1.bf16.msra.mxu0 0
  %157 = vmatprep.subr.bf16.mxu0 0
  %158 = vmatpush1.bf16.msra.mxu0 0
  %159 = vmatprep.subr.bf16.mxu0 0
  %160 = vmatpush1.bf16.msra.mxu0 0
  %161 = vmatprep.subr.bf16.mxu0 0
  %162 = vmatpush1.bf16.msra.mxu0 0
  %163 = vmatprep.subr.bf16.mxu0 0
  %164 = vmatpush1.bf16.msra.mxu0 0
  %165 = vmatprep.subr.bf16.mxu0 0
  %166 = vmatpush1.bf16.msra.mxu0 0
  %167 = vmatprep.subr.bf16.mxu0 0
  %168 = vmatpush1.bf16.msra.mxu0 0
  %169 = vmatprep.subr.bf16.mxu0 0
  %170 = vmatpush1.bf16.msra.mxu0 0
  %171 = vmatprep.subr.bf16.mxu0 0
  %172 = vmatpush1.bf16.msra.mxu0 0
  %173 = vmatprep.subr.bf16.mxu0 0
  %174 = vmatpush1.bf16.msra.mxu0 0
  %175 = vmatprep.subr.bf16.mxu0 0
  %176 = vmatpush1.bf16.msra.mxu0 0
  %177 = vmatprep.subr.bf16.mxu0 0
  %178 = vmatpush1.bf16.msra.mxu0 0
  %179 = vmatprep.subr.bf16.mxu0 0
  %180 = vmatpush1.bf16.msra.mxu0 0
  %181 = vmatprep.subr.bf16.mxu0 0
  %182 = vmatpush1.bf16.msra.mxu0 0
  %183 = vmatprep.subr.bf16.mxu0 0
  %184 = vmatpush1.bf16.msra.mxu0 0
  %185 = vmatprep.mubr.bf16.mxu0 0
  %186 = vmatmul.mubr.bf16.gmra.mrb[0].mxu0 %v69
  %v187 = vpop.f32.mrb[0].mxu0
  %v188 = vadd.f32 0.0, %v187
  %v189 = vpop.f32.mrb[0].mxu0
  %v190 = vpop.f32.mrb[0].mxu0
  %v191 = vadd.f32 0.0, %v190
  %v192 = vpop.f32.mrb[0].mxu0
  %193 = vmatprep.mubr.bf16.mxu0 0
  %194 = vmatmul.mubr.bf16.gmra.mrb[0].mxu0 %v72
  %v195 = vpop.f32.mrb[0].mxu0
  %v196 = vadd.f32 0.0, %v195
  %v197 = vpop.f32.mrb[0].mxu0
  %v198 = vpop.f32.mrb[0].mxu0
  %v199 = vadd.f32 0.0, %v198
  %v200 = vpop.f32.mrb[0].mxu0
  %201 = vmatprep.mubr.bf16.mxu0 0
  %202 = vmatmul.mubr.bf16.gmra.mrb[0].mxu0 %v75
  %v203 = vpop.f32.mrb[0].mxu0
  %v204 = vadd.f32 0.0, %v203
  %v205 = vpop.f32.mrb[0].mxu0
  %v206 = vpop.f32.mrb[0].mxu0
  %v207 = vadd.f32 0.0, %v206
  %v208 = vpop.f32.mrb[0].mxu0
  %209 = vmatprep.mubr.bf16.mxu0 0
  %210 = vmatmul.mubr.bf16.gmra.mrb[0].mxu0 %v78
  %v211 = vpop.f32.mrb[0].mxu0
  %v212 = vadd.f32 0.0, %v211
  %v213 = vpop.f32.mrb[0].mxu0
  %v214 = vpop.f32.mrb[0].mxu0
  %v215 = vadd.f32 0.0, %v214
  %v216 = vpop.f32.mrb[0].mxu0
  %217 = vdwg.mxu0
  %v218 = vld [vmem:[%s5] sm:$0x7]
  %v220 = vlaneseq
  %v221 = vshrl.u32 %v220, 7
  %v222 = vsub.s32 0, %v221
  %v223 = vrot.slane %v218, %v222
  %v224 = vlaneseq
  %v225 = vshrl.u32 %v224, 7
  %v226 = vsub.s32 1, %v225
  %v227 = vrot.slane %v218, %v226
  %v228 = vlaneseq
  %v229 = vshrl.u32 %v228, 7
  %v230 = vsub.s32 2, %v229
  %v231 = vrot.slane %v218, %v230
  %v235 = vadd.f32 %v115, %v223
  %v236 = vadd.f32 %v117, %v227
  %v237 = vadd.f32 %v188, %v231
  %v238 = vadd.f32 %v119, %v223
  %v239 = vadd.f32 %v121, %v227
  %v240 = vadd.f32 %v191, %v231
  %v241 = vadd.f32 %v125, %v223
  %v242 = vadd.f32 %v127, %v227
  %v243 = vadd.f32 %v196, %v231
  %v244 = vadd.f32 %v129, %v223
  %v245 = vadd.f32 %v131, %v227
  %v246 = vadd.f32 %v199, %v231
  %v247 = vadd.f32 %v135, %v223
  %v248 = vadd.f32 %v137, %v227
  %v249 = vadd.f32 %v204, %v231
  %v250 = vadd.f32 %v139, %v223
  %v251 = vadd.f32 %v141, %v227
  %v252 = vadd.f32 %v207, %v231
  %v253 = vadd.f32 %v145, %v223
  %v254 = vadd.f32 %v147, %v227
  %v255 = vadd.f32 %v212, %v231
  %v256 = vadd.f32 %v149, %v223
  %v257 = vadd.f32 %v151, %v227
  %v258 = vadd.f32 %v215, %v231
  %259 = vst [vmem:[#allocation2] sm:$0xff] %v235
  %260 = vst [vmem:[#allocation2 + $0x8] sm:$0xff] %v236
  %261 = vst [vmem:[#allocation2 + $0x10] sm:$0xff] %v237
  %262 = vst [vmem:[#allocation2 + $0x18] sm:$0xff] %v238
  %263 = vst [vmem:[#allocation2 + $0x20] sm:$0xff] %v239
  %264 = vst [vmem:[#allocation2 + $0x28] sm:$0xff] %v240
  %265 = vst [vmem:[#allocation2 + $0x30] sm:$0xff] %v241
  %266 = vst [vmem:[#allocation2 + $0x38] sm:$0xff] %v242
  %267 = vst [vmem:[#allocation2 + $0x40] sm:$0xff] %v243
  %268 = vst [vmem:[#allocation2 + $0x48] sm:$0xff] %v244
  %269 = vst [vmem:[#allocation2 + $0x50] sm:$0xff] %v245
  %270 = vst [vmem:[#allocation2 + $0x58] sm:$0xff] %v246
  %271 = vst [vmem:[#allocation2 + $0x60] sm:$0xff] %v247
  %272 = vst [vmem:[#allocation2 + $0x68] sm:$0xff] %v248
  %273 = vst [vmem:[#allocation2 + $0x70] sm:$0xff] %v249
  %274 = vst [vmem:[#allocation2 + $0x78] sm:$0xff] %v250
  %275 = vst [vmem:[#allocation2 + $0x80] sm:$0xff] %v251
  %276 = vst [vmem:[#allocation2 + $0x88] sm:$0xff] %v252
  %277 = vst [vmem:[#allocation2 + $0x90] sm:$0xff] %v253
  %278 = vst [vmem:[#allocation2 + $0x98] sm:$0xff] %v254
  %279 = vst [vmem:[#allocation2 + $0xa0] sm:$0xff] %v255
  %280 = vst [vmem:[#allocation2 + $0xa8] sm:$0xff] %v256
  %281 = vst [vmem:[#allocation2 + $0xb0] sm:$0xff] %v257
  %282 = vst [vmem:[#allocation2 + $0xb8] sm:$0xff] %v258
  %v283 = vld [vmem:[%s6] sm:$0x1]
  %v284 = vld [vmem:[%s8] sm:$0xff]
  %v285 = vpack.c.bf16 %v284, %v284
  %v286 = vld [vmem:[#allocation2] sm:$0xff]
  %v287 = vld [vmem:[#allocation2 + $0x8] sm:$0xff]
  %v288 = vld [vmem:[%s3] sm:$0xff]
  %v289 = vld [vmem:[%s3 + $0x8] sm:$0xff]
  %v290 = vld [vmem:[%s3 + $0x10] sm:$0xff]
  %v291 = vld [vmem:[%s3 + $0x18] sm:$0xff]
  %v292 = vld [vmem:[%s3 + $0x20] sm:$0xff]
  %v293 = vld [vmem:[%s3 + $0x28] sm:$0xff]
  %v294 = vld [vmem:[%s3 + $0x30] sm:$0xff]
  %v295 = vld [vmem:[%s3 + $0x38] sm:$0xff]
  %v296 = vld [vmem:[%s3 + $0x40] sm:$0xff]
  %v297 = vld [vmem:[%s3 + $0x48] sm:$0xff]
  %v298 = vld [vmem:[%s3 + $0x50] sm:$0xff]
  %v299 = vld [vmem:[%s3 + $0x58] sm:$0xff]
  %v300 = vld [vmem:[%s3 + $0x60] sm:$0xff]
  %v301 = vld [vmem:[%s3 + $0x68] sm:$0xff]
  %v302 = vld [vmem:[%s3 + $0x70] sm:$0xff]
  %v303 = vld [vmem:[%s3 + $0x78] sm:$0xff]
  %v320 = vunpack.c.l.b16 %v288
  %v321 = vunpack.c.h.b16 %v288
  %v322 = vunpack.c.l.b16 %v289
  %v323 = vunpack.c.h.b16 %v289
  %v324 = vunpack.c.l.b16 %v290
  %v325 = vunpack.c.h.b16 %v290
  %v326 = vunpack.c.l.b16 %v291
  %v327 = vunpack.c.h.b16 %v291
  %v328 = vunpack.c.l.b16 %v292
  %v329 = vunpack.c.h.b16 %v292
  %v330 = vunpack.c.l.b16 %v293
  %v331 = vunpack.c.h.b16 %v293
  %v332 = vunpack.c.l.b16 %v294
  %v333 = vunpack.c.h.b16 %v294
  %v334 = vunpack.c.l.b16 %v295
  %v335 = vunpack.c.h.b16 %v295
  %v336 = vunpack.c.l.b16 %v296
  %v337 = vunpack.c.h.b16 %v296
  %v338 = vunpack.c.l.b16 %v297
  %v339 = vunpack.c.h.b16 %v297
  %v340 = vunpack.c.l.b16 %v298
  %v341 = vunpack.c.h.b16 %v298
  %v342 = vunpack.c.l.b16 %v299
  %v343 = vunpack.c.h.b16 %v299
  %v344 = vunpack.c.l.b16 %v300
  %v345 = vunpack.c.h.b16 %v300
  %v346 = vunpack.c.l.b16 %v301
  %v347 = vunpack.c.h.b16 %v301
  %v348 = vunpack.c.l.b16 %v302
  %v349 = vunpack.c.h.b16 %v302
  %v350 = vunpack.c.l.b16 %v303
  %v351 = vunpack.c.h.b16 %v303
  %v352 = vpack.c.b16 %v322, %v320
  %v353 = vpack.c.b16 %v323, %v321
  %v354 = vpack.c.b16 %v326, %v324
  %v355 = vpack.c.b16 %v327, %v325
  %v356 = vpack.c.b16 %v330, %v328
  %v357 = vpack.c.b16 %v331, %v329
  %v358 = vpack.c.b16 %v334, %v332
  %v359 = vpack.c.b16 %v335, %v333
  %v360 = vpack.c.b16 %v338, %v336
  %v361 = vpack.c.b16 %v339, %v337
  %v362 = vpack.c.b16 %v342, %v340
  %v363 = vpack.c.b16 %v343, %v341
  %v364 = vpack.c.b16 %v346, %v344
  %v365 = vpack.c.b16 %v347, %v345
  %v366 = vpack.c.b16 %v350, %v348
  %v367 = vpack.c.b16 %v351, %v349
  %384 = vmatprep.subr.bf16.mxu0 %v353
  %385 = vmatpush1.bf16.msra.mxu0 %v352
  %386 = vmatprep.subr.bf16.mxu0 %v355
  %387 = vmatpush1.bf16.msra.mxu0 %v354
  %388 = vmatprep.subr.bf16.mxu0 %v357
  %389 = vmatpush1.bf16.msra.mxu0 %v356
  %390 = vmatprep.subr.bf16.mxu0 %v359
  %391 = vmatpush1.bf16.msra.mxu0 %v358
  %392 = vmatprep.subr.bf16.mxu0 %v361
  %393 = vmatpush1.bf16.msra.mxu0 %v360
  %394 = vmatprep.subr.bf16.mxu0 %v363
  %395 = vmatpush1.bf16.msra.mxu0 %v362
  %396 = vmatprep.subr.bf16.mxu0 %v365
  %397 = vmatpush1.bf16.msra.mxu0 %v364
  %398 = vmatprep.subr.bf16.mxu0 %v367
  %399 = vmatpush1.bf16.msra.mxu0 %v366
  %400 = vmatprep.subr.bf16.mxu0 0
  %401 = vmatpush1.bf16.msra.mxu0 0
  %402 = vmatprep.subr.bf16.mxu0 0
  %403 = vmatpush1.bf16.msra.mxu0 0
  %404 = vmatprep.subr.bf16.mxu0 0
  %405 = vmatpush1.bf16.msra.mxu0 0
  %406 = vmatprep.subr.bf16.mxu0 0
  %407 = vmatpush1.bf16.msra.mxu0 0
  %408 = vmatprep.subr.bf16.mxu0 0
  %409 = vmatpush1.bf16.msra.mxu0 0
  %410 = vmatprep.subr.bf16.mxu0 0
  %411 = vmatpush1.bf16.msra.mxu0 0
  %412 = vmatprep.subr.bf16.mxu0 0
  %413 = vmatpush1.bf16.msra.mxu0 0
  %414 = vmatprep.subr.bf16.mxu0 0
  %415 = vmatpush1.bf16.msra.mxu0 0
  %416 = vmatprep.mubr.bf16.mxu0 0
  %417 = vmatmul.mubr.bf16.gmra.mrb[0].mxu0 %v285
  %v418 = vpop.f32.mrb[0].mxu0
  %v419 = vadd.f32 0.0, %v418
  %v420 = vpop.f32.mrb[0].mxu0
  %v421 = vadd.f32 0.0, %v420
  %v422 = vpop.f32.mrb[0].mxu0
  %v423 = vpop.f32.mrb[0].mxu0
  %424 = vdwg.mxu0
  %v425 = vadd.f32 %v286, %v419
  %v426 = vadd.f32 %v287, %v421
  %v427 = vxor.u32 %v425, 2147483648
  %v428 = vxor.u32 %v426, 2147483648
  %v429 = vmul.f32 %v427, 1.442695
  %v430 = vpow.pop %v429
  %v431 = vmul.f32 %v428, 1.442695
  %v432 = vpow.pop %v431
  %v433 = vadd.f32 %v430, 1.0
  %v434 = vadd.f32 %v432, 1.0
  %v435 = vrcp.pop %v433
  %v436 = vmul.f32 1.0, %v435
  %v437 = vrcp.pop %v434
  %v438 = vmul.f32 1.0, %v437
  %v439 = vld [vmem:[%s4] sm:$0xf]
  %v440 = vld [vmem:[%s4 + $0x4] sm:$0xf]
  %v441 = vld [vmem:[%s4 + $0x8] sm:$0xf]
  %v442 = vld [vmem:[%s4 + $0xc] sm:$0xf]
  %v443 = vld [vmem:[%s4 + $0x10] sm:$0xf]
  %v444 = vld [vmem:[%s4 + $0x14] sm:$0xf]
  %v445 = vld [vmem:[%s4 + $0x18] sm:$0xf]
  %v446 = vld [vmem:[%s4 + $0x1c] sm:$0xf]
  %v447 = vld [vmem:[%s4 + $0x20] sm:$0xf]
  %v448 = vld [vmem:[%s4 + $0x24] sm:$0xf]
  %v449 = vld [vmem:[%s4 + $0x28] sm:$0xf]
  %v450 = vld [vmem:[%s4 + $0x2c] sm:$0xf]
  %v451 = vld [vmem:[%s4 + $0x30] sm:$0xf]
  %v452 = vld [vmem:[%s4 + $0x34] sm:$0xf]
  %v453 = vld [vmem:[%s4 + $0x38] sm:$0xf]
  %v454 = vld [vmem:[%s4 + $0x3c] sm:$0xf]
  %v455 = vld [vmem:[#allocation2 + $0x10] sm:$0xff]
  %v457 = vlaneseq
  %v458 = vshrl.u32 %v457, 7
  %v459 = vsub.s32 0, %v458
  %v460 = vrot.slane %v283, %v459
  %v478 = vunpack.c.l.b16 %v439
  %v479 = vunpack.c.l.b16 %v440
  %v480 = vunpack.c.l.b16 %v441
  %v481 = vunpack.c.l.b16 %v442
  %v482 = vunpack.c.l.b16 %v443
  %v483 = vunpack.c.l.b16 %v444
  %v484 = vunpack.c.l.b16 %v445
  %v485 = vunpack.c.l.b16 %v446
  %v486 = vunpack.c.l.b16 %v447
  %v487 = vunpack.c.l.b16 %v448
  %v488 = vunpack.c.l.b16 %v449
  %v489 = vunpack.c.l.b16 %v450
  %v490 = vunpack.c.l.b16 %v451
  %v491 = vunpack.c.l.b16 %v452
  %v492 = vunpack.c.l.b16 %v453
  %v493 = vunpack.c.l.b16 %v454
  %v494 = vpack.c.b16 %v479, %v478
  %v495 = vpack.c.b16 %v481, %v480
  %v496 = vpack.c.b16 %v483, %v482
  %v497 = vpack.c.b16 %v485, %v484
  %v498 = vpack.c.b16 %v487, %v486
  %v499 = vpack.c.b16 %v489, %v488
  %v500 = vpack.c.b16 %v491, %v490
  %v501 = vpack.c.b16 %v493, %v492
  %510 = vmatprep.subr.bf16.mxu0 0
  %511 = vmatpush1.bf16.msra.mxu0 %v494
  %512 = vmatprep.subr.bf16.mxu0 0
  %513 = vmatpush1.bf16.msra.mxu0 %v495
  %514 = vmatprep.subr.bf16.mxu0 0
  %515 = vmatpush1.bf16.msra.mxu0 %v496
  %516 = vmatprep.subr.bf16.mxu0 0
  %517 = vmatpush1.bf16.msra.mxu0 %v497
  %518 = vmatprep.subr.bf16.mxu0 0
  %519 = vmatpush1.bf16.msra.mxu0 %v498
  %520 = vmatprep.subr.bf16.mxu0 0
  %521 = vmatpush1.bf16.msra.mxu0 %v499
  %522 = vmatprep.subr.bf16.mxu0 0
  %523 = vmatpush1.bf16.msra.mxu0 %v500
  %524 = vmatprep.subr.bf16.mxu0 0
  %525 = vmatpush1.bf16.msra.mxu0 %v501
  %526 = vmatprep.subr.bf16.mxu0 0
  %527 = vmatpush1.bf16.msra.mxu0 0
  %528 = vmatprep.subr.bf16.mxu0 0
  %529 = vmatpush1.bf16.msra.mxu0 0
  %530 = vmatprep.subr.bf16.mxu0 0
  %531 = vmatpush1.bf16.msra.mxu0 0
  %532 = vmatprep.subr.bf16.mxu0 0
  %533 = vmatpush1.bf16.msra.mxu0 0
  %534 = vmatprep.subr.bf16.mxu0 0
  %535 = vmatpush1.bf16.msra.mxu0 0
  %536 = vmatprep.subr.bf16.mxu0 0
  %537 = vmatpush1.bf16.msra.mxu0 0
  %538 = vmatprep.subr.bf16.mxu0 0
  %539 = vmatpush1.bf16.msra.mxu0 0
  %540 = vmatprep.subr.bf16.mxu0 0
  %541 = vmatpush1.bf16.msra.mxu0 0
  %542 = vmatprep.mubr.bf16.mxu0 0
  %543 = vmatmul.mubr.bf16.gmra.mrb[0].mxu0 %v285
  %v544 = vpop.f32.mrb[0].mxu0
  %v545 = vadd.f32 %v460, %v544
  %v546 = vpop.f32.mrb[0].mxu0
  %v547 = vpop.f32.mrb[0].mxu0
  %v548 = vpop.f32.mrb[0].mxu0
  %549 = vdwg.mxu0
  %v550 = vmul.f32 %v436, %v545
  %v551 = vadd.f32 %v455, %v550
  %v552 = vtanh.pop %v551
  %v553 = vsub.f32 1.0, %v438
  %v554 = vmul.f32 %v553, %v552
  %v555 = vmul.f32 %v438, %v284
  %v556 = vadd.f32 %v554, %v555
  %557 = vst [vmem:[%s7] sm:$0xff] %v556
  %v558 = vpack.c.bf16 %v556, %v556
  %s559 = scalar_lea.vmem [#allocation2], 24
  %v560 = vld [vmem:[%s559] sm:$0xff]
  %v561 = vld [vmem:[%s559 + $0x8] sm:$0xff]
  %v562 = vld [vmem:[%s3] sm:$0xff]
  %v563 = vld [vmem:[%s3 + $0x8] sm:$0xff]
  %v564 = vld [vmem:[%s3 + $0x10] sm:$0xff]
  %v565 = vld [vmem:[%s3 + $0x18] sm:$0xff]
  %v566 = vld [vmem:[%s3 + $0x20] sm:$0xff]
  %v567 = vld [vmem:[%s3 + $0x28] sm:$0xff]
  %v568 = vld [vmem:[%s3 + $0x30] sm:$0xff]
  %v569 = vld [vmem:[%s3 + $0x38] sm:$0xff]
  %v570 = vld [vmem:[%s3 + $0x40] sm:$0xff]
  %v571 = vld [vmem:[%s3 + $0x48] sm:$0xff]
  %v572 = vld [vmem:[%s3 + $0x50] sm:$0xff]
  %v573 = vld [vmem:[%s3 + $0x58] sm:$0xff]
  %v574 = vld [vmem:[%s3 + $0x60] sm:$0xff]
  %v575 = vld [vmem:[%s3 + $0x68] sm:$0xff]
  %v576 = vld [vmem:[%s3 + $0x70] sm:$0xff]
  %v577 = vld [vmem:[%s3 + $0x78] sm:$0xff]
  %v594 = vunpack.c.l.b16 %v562
  %v595 = vunpack.c.h.b16 %v562
  %v596 = vunpack.c.l.b16 %v563
  %v597 = vunpack.c.h.b16 %v563
  %v598 = vunpack.c.l.b16 %v564
  %v599 = vunpack.c.h.b16 %v564
  %v600 = vunpack.c.l.b16 %v565
  %v601 = vunpack.c.h.b16 %v565
  %v602 = vunpack.c.l.b16 %v566
  %v603 = vunpack.c.h.b16 %v566
  %v604 = vunpack.c.l.b16 %v567
  %v605 = vunpack.c.h.b16 %v567
  %v606 = vunpack.c.l.b16 %v568
  %v607 = vunpack.c.h.b16 %v568
  %v608 = vunpack.c.l.b16 %v569
  %v609 = vunpack.c.h.b16 %v569
  %v610 = vunpack.c.l.b16 %v570
  %v611 = vunpack.c.h.b16 %v570
  %v612 = vunpack.c.l.b16 %v571
  %v613 = vunpack.c.h.b16 %v571
  %v614 = vunpack.c.l.b16 %v572
  %v615 = vunpack.c.h.b16 %v572
  %v616 = vunpack.c.l.b16 %v573
  %v617 = vunpack.c.h.b16 %v573
  %v618 = vunpack.c.l.b16 %v574
  %v619 = vunpack.c.h.b16 %v574
  %v620 = vunpack.c.l.b16 %v575
  %v621 = vunpack.c.h.b16 %v575
  %v622 = vunpack.c.l.b16 %v576
  %v623 = vunpack.c.h.b16 %v576
  %v624 = vunpack.c.l.b16 %v577
  %v625 = vunpack.c.h.b16 %v577
  %v626 = vpack.c.b16 %v596, %v594
  %v627 = vpack.c.b16 %v597, %v595
  %v628 = vpack.c.b16 %v600, %v598
  %v629 = vpack.c.b16 %v601, %v599
  %v630 = vpack.c.b16 %v604, %v602
  %v631 = vpack.c.b16 %v605, %v603
  %v632 = vpack.c.b16 %v608, %v606
  %v633 = vpack.c.b16 %v609, %v607
  %v634 = vpack.c.b16 %v612, %v610
  %v635 = vpack.c.b16 %v613, %v611
  %v636 = vpack.c.b16 %v616, %v614
  %v637 = vpack.c.b16 %v617, %v615
  %v638 = vpack.c.b16 %v620, %v618
  %v639 = vpack.c.b16 %v621, %v619
  %v640 = vpack.c.b16 %v624, %v622
  %v641 = vpack.c.b16 %v625, %v623
  %658 = vmatprep.subr.bf16.mxu0 %v627
  %659 = vmatpush1.bf16.msra.mxu0 %v626
  %660 = vmatprep.subr.bf16.mxu0 %v629
  %661 = vmatpush1.bf16.msra.mxu0 %v628
  %662 = vmatprep.subr.bf16.mxu0 %v631
  %663 = vmatpush1.bf16.msra.mxu0 %v630
  %664 = vmatprep.subr.bf16.mxu0 %v633
  %665 = vmatpush1.bf16.msra.mxu0 %v632
  %666 = vmatprep.subr.bf16.mxu0 %v635
  %667 = vmatpush1.bf16.msra.mxu0 %v634
  %668 = vmatprep.subr.bf16.mxu0 %v637
  %669 = vmatpush1.bf16.msra.mxu0 %v636
  %670 = vmatprep.subr.bf16.mxu0 %v639
  %671 = vmatpush1.bf16.msra.mxu0 %v638
  %672 = vmatprep.subr.bf16.mxu0 %v641
  %673 = vmatpush1.bf16.msra.mxu0 %v640
  %674 = vmatprep.subr.bf16.mxu0 0
  %675 = vmatpush1.bf16.msra.mxu0 0
  %676 = vmatprep.subr.bf16.mxu0 0
  %677 = vmatpush1.bf16.msra.mxu0 0
  %678 = vmatprep.subr.bf16.mxu0 0
  %679 = vmatpush1.bf16.msra.mxu0 0
  %680 = vmatprep.subr.bf16.mxu0 0
  %681 = vmatpush1.bf16.msra.mxu0 0
  %682 = vmatprep.subr.bf16.mxu0 0
  %683 = vmatpush1.bf16.msra.mxu0 0
  %684 = vmatprep.subr.bf16.mxu0 0
  %685 = vmatpush1.bf16.msra.mxu0 0
  %686 = vmatprep.subr.bf16.mxu0 0
  %687 = vmatpush1.bf16.msra.mxu0 0
  %688 = vmatprep.subr.bf16.mxu0 0
  %689 = vmatpush1.bf16.msra.mxu0 0
  %690 = vmatprep.mubr.bf16.mxu0 0
  %691 = vmatmul.mubr.bf16.gmra.mrb[0].mxu0 %v558
  %v692 = vpop.f32.mrb[0].mxu0
  %v693 = vadd.f32 0.0, %v692
  %v694 = vpop.f32.mrb[0].mxu0
  %v695 = vadd.f32 0.0, %v694
  %v696 = vpop.f32.mrb[0].mxu0
  %v697 = vpop.f32.mrb[0].mxu0
  %698 = vdwg.mxu0
  %v699 = vadd.f32 %v560, %v693
  %v700 = vadd.f32 %v561, %v695
  %v701 = vxor.u32 %v699, 2147483648
  %v702 = vxor.u32 %v700, 2147483648
  %v703 = vmul.f32 %v701, 1.442695
  %v704 = vpow.pop %v703
  %v705 = vmul.f32 %v702, 1.442695
  %v706 = vpow.pop %v705
  %v707 = vadd.f32 %v704, 1.0
  %v708 = vadd.f32 %v706, 1.0
  %v709 = vrcp.pop %v707
  %v710 = vmul.f32 1.0, %v709
  %v711 = vrcp.pop %v708
  %v712 = vmul.f32 1.0, %v711
  %v713 = vld [vmem:[%s4] sm:$0xf]
  %v714 = vld [vmem:[%s4 + $0x4] sm:$0xf]
  %v715 = vld [vmem:[%s4 + $0x8] sm:$0xf]
  %v716 = vld [vmem:[%s4 + $0xc] sm:$0xf]
  %v717 = vld [vmem:[%s4 + $0x10] sm:$0xf]
  %v718 = vld [vmem:[%s4 + $0x14] sm:$0xf]
  %v719 = vld [vmem:[%s4 + $0x18] sm:$0xf]
  %v720 = vld [vmem:[%s4 + $0x1c] sm:$0xf]
  %v721 = vld [vmem:[%s4 + $0x20] sm:$0xf]
  %v722 = vld [vmem:[%s4 + $0x24] sm:$0xf]
  %v723 = vld [vmem:[%s4 + $0x28] sm:$0xf]
  %v724 = vld [vmem:[%s4 + $0x2c] sm:$0xf]
  %v725 = vld [vmem:[%s4 + $0x30] sm:$0xf]
  %v726 = vld [vmem:[%s4 + $0x34] sm:$0xf]
  %v727 = vld [vmem:[%s4 + $0x38] sm:$0xf]
  %v728 = vld [vmem:[%s4 + $0x3c] sm:$0xf]
  %v729 = vld [vmem:[%s559 + $0x10] sm:$0xff]
  %v746 = vunpack.c.l.b16 %v713
  %v747 = vunpack.c.l.b16 %v714
  %v748 = vunpack.c.l.b16 %v715
  %v749 = vunpack.c.l.b16 %v716
  %v750 = vunpack.c.l.b16 %v717
  %v751 = vunpack.c.l.b16 %v718
  %v752 = vunpack.c.l.b16 %v719
  %v753 = vunpack.c.l.b16 %v720
  %v754 = vunpack.c.l.b16 %v721
  %v755 = vunpack.c.l.b16 %v722
  %v756 = vunpack.c.l.b16 %v723
  %v757 = vunpack.c.l.b16 %v724
  %v758 = vunpack.c.l.b16 %v725
  %v759 = vunpack.c.l.b16 %v726
  %v760 = vunpack.c.l.b16 %v727
  %v761 = vunpack.c.l.b16 %v728
  %v762 = vpack.c.b16 %v747, %v746
  %v763 = vpack.c.b16 %v749, %v748
  %v764 = vpack.c.b16 %v751, %v750
  %v765 = vpack.c.b16 %v753, %v752
  %v766 = vpack.c.b16 %v755, %v754
  %v767 = vpack.c.b16 %v757, %v756
  %v768 = vpack.c.b16 %v759, %v758
  %v769 = vpack.c.b16 %v761, %v760
  %778 = vmatprep.subr.bf16.mxu0 0
  %779 = vmatpush1.bf16.msra.mxu0 %v762
  %780 = vmatprep.subr.bf16.mxu0 0
  %781 = vmatpush1.bf16.msra.mxu0 %v763
  %782 = vmatprep.subr.bf16.mxu0 0
  %783 = vmatpush1.bf16.msra.mxu0 %v764
  %784 = vmatprep.subr.bf16.mxu0 0
  %785 = vmatpush1.bf16.msra.mxu0 %v765
  %786 = vmatprep.subr.bf16.mxu0 0
  %787 = vmatpush1.bf16.msra.mxu0 %v766
  %788 = vmatprep.subr.bf16.mxu0 0
  %789 = vmatpush1.bf16.msra.mxu0 %v767
  %790 = vmatprep.subr.bf16.mxu0 0
  %791 = vmatpush1.bf16.msra.mxu0 %v768
  %792 = vmatprep.subr.bf16.mxu0 0
  %793 = vmatpush1.bf16.msra.mxu0 %v769
  %794 = vmatprep.subr.bf16.mxu0 0
  %795 = vmatpush1.bf16.msra.mxu0 0
  %796 = vmatprep.subr.bf16.mxu0 0
  %797 = vmatpush1.bf16.msra.mxu0 0
  %798 = vmatprep.subr.bf16.mxu0 0
  %799 = vmatpush1.bf16.msra.mxu0 0
  %800 = vmatprep.subr.bf16.mxu0 0
  %801 = vmatpush1.bf16.msra.mxu0 0
  %802 = vmatprep.subr.bf16.mxu0 0
  %803 = vmatpush1.bf16.msra.mxu0 0
  %804 = vmatprep.subr.bf16.mxu0 0
  %805 = vmatpush1.bf16.msra.mxu0 0
  %806 = vmatprep.subr.bf16.mxu0 0
  %807 = vmatpush1.bf16.msra.mxu0 0
  %808 = vmatprep.subr.bf16.mxu0 0
  %809 = vmatpush1.bf16.msra.mxu0 0
  %810 = vmatprep.mubr.bf16.mxu0 0
  %811 = vmatmul.mubr.bf16.gmra.mrb[0].mxu0 %v558
  %v812 = vpop.f32.mrb[0].mxu0
  %v813 = vadd.f32 %v460, %v812
  %v814 = vpop.f32.mrb[0].mxu0
  %v815 = vpop.f32.mrb[0].mxu0
  %v816 = vpop.f32.mrb[0].mxu0
  %817 = vdwg.mxu0
  %v818 = vmul.f32 %v710, %v813
  %v819 = vadd.f32 %v729, %v818
  %v820 = vtanh.pop %v819
  %v821 = vsub.f32 1.0, %v712
  %v822 = vmul.f32 %v821, %v820
  %v823 = vmul.f32 %v712, %v556
  %v824 = vadd.f32 %v822, %v823
  %s825 = scalar_lea.vmem %s7, 8
  %826 = vst [vmem:[%s825] sm:$0xff] %v824
  %v827 = vpack.c.bf16 %v824, %v824
  %s828 = scalar_lea.vmem [#allocation2], 48
  %v829 = vld [vmem:[%s828] sm:$0xff]
  %v830 = vld [vmem:[%s828 + $0x8] sm:$0xff]
  %v831 = vld [vmem:[%s3] sm:$0xff]
  %v832 = vld [vmem:[%s3 + $0x8] sm:$0xff]
  %v833 = vld [vmem:[%s3 + $0x10] sm:$0xff]
  %v834 = vld [vmem:[%s3 + $0x18] sm:$0xff]
  %v835 = vld [vmem:[%s3 + $0x20] sm:$0xff]
  %v836 = vld [vmem:[%s3 + $0x28] sm:$0xff]
  %v837 = vld [vmem:[%s3 + $0x30] sm:$0xff]
  %v838 = vld [vmem:[%s3 + $0x38] sm:$0xff]
  %v839 = vld [vmem:[%s3 + $0x40] sm:$0xff]
  %v840 = vld [vmem:[%s3 + $0x48] sm:$0xff]
  %v841 = vld [vmem:[%s3 + $0x50] sm:$0xff]
  %v842 = vld [vmem:[%s3 + $0x58] sm:$0xff]
  %v843 = vld [vmem:[%s3 + $0x60] sm:$0xff]
  %v844 = vld [vmem:[%s3 + $0x68] sm:$0xff]
  %v845 = vld [vmem:[%s3 + $0x70] sm:$0xff]
  %v846 = vld [vmem:[%s3 + $0x78] sm:$0xff]
  %v863 = vunpack.c.l.b16 %v831
  %v864 = vunpack.c.h.b16 %v831
  %v865 = vunpack.c.l.b16 %v832
  %v866 = vunpack.c.h.b16 %v832
  %v867 = vunpack.c.l.b16 %v833
  %v868 = vunpack.c.h.b16 %v833
  %v869 = vunpack.c.l.b16 %v834
  %v870 = vunpack.c.h.b16 %v834
  %v871 = vunpack.c.l.b16 %v835
  %v872 = vunpack.c.h.b16 %v835
  %v873 = vunpack.c.l.b16 %v836
  %v874 = vunpack.c.h.b16 %v836
  %v875 = vunpack.c.l.b16 %v837
  %v876 = vunpack.c.h.b16 %v837
  %v877 = vunpack.c.l.b16 %v838
  %v878 = vunpack.c.h.b16 %v838
  %v879 = vunpack.c.l.b16 %v839
  %v880 = vunpack.c.h.b16 %v839
  %v881 = vunpack.c.l.b16 %v840
  %v882 = vunpack.c.h.b16 %v840
  %v883 = vunpack.c.l.b16 %v841
  %v884 = vunpack.c.h.b16 %v841
  %v885 = vunpack.c.l.b16 %v842
  %v886 = vunpack.c.h.b16 %v842
  %v887 = vunpack.c.l.b16 %v843
  %v888 = vunpack.c.h.b16 %v843
  %v889 = vunpack.c.l.b16 %v844
  %v890 = vunpack.c.h.b16 %v844
  %v891 = vunpack.c.l.b16 %v845
  %v892 = vunpack.c.h.b16 %v845
  %v893 = vunpack.c.l.b16 %v846
  %v894 = vunpack.c.h.b16 %v846
  %v895 = vpack.c.b16 %v865, %v863
  %v896 = vpack.c.b16 %v866, %v864
  %v897 = vpack.c.b16 %v869, %v867
  %v898 = vpack.c.b16 %v870, %v868
  %v899 = vpack.c.b16 %v873, %v871
  %v900 = vpack.c.b16 %v874, %v872
  %v901 = vpack.c.b16 %v877, %v875
  %v902 = vpack.c.b16 %v878, %v876
  %v903 = vpack.c.b16 %v881, %v879
  %v904 = vpack.c.b16 %v882, %v880
  %v905 = vpack.c.b16 %v885, %v883
  %v906 = vpack.c.b16 %v886, %v884
  %v907 = vpack.c.b16 %v889, %v887
  %v908 = vpack.c.b16 %v890, %v888
  %v909 = vpack.c.b16 %v893, %v891
  %v910 = vpack.c.b16 %v894, %v892
  %927 = vmatprep.subr.bf16.mxu0 %v896
  %928 = vmatpush1.bf16.msra.mxu0 %v895
  %929 = vmatprep.subr.bf16.mxu0 %v898
  %930 = vmatpush1.bf16.msra.mxu0 %v897
  %931 = vmatprep.subr.bf16.mxu0 %v900
  %932 = vmatpush1.bf16.msra.mxu0 %v899
  %933 = vmatprep.subr.bf16.mxu0 %v902
  %934 = vmatpush1.bf16.msra.mxu0 %v901
  %935 = vmatprep.subr.bf16.mxu0 %v904
  %936 = vmatpush1.bf16.msra.mxu0 %v903
  %937 = vmatprep.subr.bf16.mxu0 %v906
  %938 = vmatpush1.bf16.msra.mxu0 %v905
  %939 = vmatprep.subr.bf16.mxu0 %v908
  %940 = vmatpush1.bf16.msra.mxu0 %v907
  %941 = vmatprep.subr.bf16.mxu0 %v910
  %942 = vmatpush1.bf16.msra.mxu0 %v909
  %943 = vmatprep.subr.bf16.mxu0 0
  %944 = vmatpush1.bf16.msra.mxu0 0
  %945 = vmatprep.subr.bf16.mxu0 0
  %946 = vmatpush1.bf16.msra.mxu0 0
  %947 = vmatprep.subr.bf16.mxu0 0
  %948 = vmatpush1.bf16.msra.mxu0 0
  %949 = vmatprep.subr.bf16.mxu0 0
  %950 = vmatpush1.bf16.msra.mxu0 0
  %951 = vmatprep.subr.bf16.mxu0 0
  %952 = vmatpush1.bf16.msra.mxu0 0
  %953 = vmatprep.subr.bf16.mxu0 0
  %954 = vmatpush1.bf16.msra.mxu0 0
  %955 = vmatprep.subr.bf16.mxu0 0
  %956 = vmatpush1.bf16.msra.mxu0 0
  %957 = vmatprep.subr.bf16.mxu0 0
  %958 = vmatpush1.bf16.msra.mxu0 0
  %959 = vmatprep.mubr.bf16.mxu0 0
  %960 = vmatmul.mubr.bf16.gmra.mrb[0].mxu0 %v827
  %v961 = vpop.f32.mrb[0].mxu0
  %v962 = vadd.f32 0.0, %v961
  %v963 = vpop.f32.mrb[0].mxu0
  %v964 = vadd.f32 0.0, %v963
  %v965 = vpop.f32.mrb[0].mxu0
  %v966 = vpop.f32.mrb[0].mxu0
  %967 = vdwg.mxu0
  %v968 = vadd.f32 %v829, %v962
  %v969 = vadd.f32 %v830, %v964
  %v970 = vxor.u32 %v968, 2147483648
  %v971 = vxor.u32 %v969, 2147483648
  %v972 = vmul.f32 %v970, 1.442695
  %v973 = vpow.pop %v972
  %v974 = vmul.f32 %v971, 1.442695
  %v975 = vpow.pop %v974
  %v976 = vadd.f32 %v973, 1.0
  %v977 = vadd.f32 %v975, 1.0
  %v978 = vrcp.pop %v976
  %v979 = vmul.f32 1.0, %v978
  %v980 = vrcp.pop %v977
  %v981 = vmul.f32 1.0, %v980
  %v982 = vld [vmem:[%s4] sm:$0xf]
  %v983 = vld [vmem:[%s4 + $0x4] sm:$0xf]
  %v984 = vld [vmem:[%s4 + $0x8] sm:$0xf]
  %v985 = vld [vmem:[%s4 + $0xc] sm:$0xf]
  %v986 = vld [vmem:[%s4 + $0x10] sm:$0xf]
  %v987 = vld [vmem:[%s4 + $0x14] sm:$0xf]
  %v988 = vld [vmem:[%s4 + $0x18] sm:$0xf]
  %v989 = vld [vmem:[%s4 + $0x1c] sm:$0xf]
  %v990 = vld [vmem:[%s4 + $0x20] sm:$0xf]
  %v991 = vld [vmem:[%s4 + $0x24] sm:$0xf]
  %v992 = vld [vmem:[%s4 + $0x28] sm:$0xf]
  %v993 = vld [vmem:[%s4 + $0x2c] sm:$0xf]
  %v994 = vld [vmem:[%s4 + $0x30] sm:$0xf]
  %v995 = vld [vmem:[%s4 + $0x34] sm:$0xf]
  %v996 = vld [vmem:[%s4 + $0x38] sm:$0xf]
  %v997 = vld [vmem:[%s4 + $0x3c] sm:$0xf]
  %v998 = vld [vmem:[%s828 + $0x10] sm:$0xff]
  %v1015 = vunpack.c.l.b16 %v982
  %v1016 = vunpack.c.l.b16 %v983
  %v1017 = vunpack.c.l.b16 %v984
  %v1018 = vunpack.c.l.b16 %v985
  %v1019 = vunpack.c.l.b16 %v986
  %v1020 = vunpack.c.l.b16 %v987
  %v1021 = vunpack.c.l.b16 %v988
  %v1022 = vunpack.c.l.b16 %v989
  %v1023 = vunpack.c.l.b16 %v990
  %v1024 = vunpack.c.l.b16 %v991
  %v1025 = vunpack.c.l.b16 %v992
  %v1026 = vunpack.c.l.b16 %v993
  %v1027 = vunpack.c.l.b16 %v994
  %v1028 = vunpack.c.l.b16 %v995
  %v1029 = vunpack.c.l.b16 %v996
  %v1030 = vunpack.c.l.b16 %v997
  %v1031 = vpack.c.b16 %v1016, %v1015
  %v1032 = vpack.c.b16 %v1018, %v1017
  %v1033 = vpack.c.b16 %v1020, %v1019
  %v1034 = vpack.c.b16 %v1022, %v1021
  %v1035 = vpack.c.b16 %v1024, %v1023
  %v1036 = vpack.c.b16 %v1026, %v1025
  %v1037 = vpack.c.b16 %v1028, %v1027
  %v1038 = vpack.c.b16 %v1030, %v1029
  %1047 = vmatprep.subr.bf16.mxu0 0
  %1048 = vmatpush1.bf16.msra.mxu0 %v1031
  %1049 = vmatprep.subr.bf16.mxu0 0
  %1050 = vmatpush1.bf16.msra.mxu0 %v1032
  %1051 = vmatprep.subr.bf16.mxu0 0
  %1052 = vmatpush1.bf16.msra.mxu0 %v1033
  %1053 = vmatprep.subr.bf16.mxu0 0
  %1054 = vmatpush1.bf16.msra.mxu0 %v1034
  %1055 = vmatprep.subr.bf16.mxu0 0
  %1056 = vmatpush1.bf16.msra.mxu0 %v1035
  %1057 = vmatprep.subr.bf16.mxu0 0
  %1058 = vmatpush1.bf16.msra.mxu0 %v1036
  %1059 = vmatprep.subr.bf16.mxu0 0
  %1060 = vmatpush1.bf16.msra.mxu0 %v1037
  %1061 = vmatprep.subr.bf16.mxu0 0
  %1062 = vmatpush1.bf16.msra.mxu0 %v1038
  %1063 = vmatprep.subr.bf16.mxu0 0
  %1064 = vmatpush1.bf16.msra.mxu0 0
  %1065 = vmatprep.subr.bf16.mxu0 0
  %1066 = vmatpush1.bf16.msra.mxu0 0
  %1067 = vmatprep.subr.bf16.mxu0 0
  %1068 = vmatpush1.bf16.msra.mxu0 0
  %1069 = vmatprep.subr.bf16.mxu0 0
  %1070 = vmatpush1.bf16.msra.mxu0 0
  %1071 = vmatprep.subr.bf16.mxu0 0
  %1072 = vmatpush1.bf16.msra.mxu0 0
  %1073 = vmatprep.subr.bf16.mxu0 0
  %1074 = vmatpush1.bf16.msra.mxu0 0
  %1075 = vmatprep.subr.bf16.mxu0 0
  %1076 = vmatpush1.bf16.msra.mxu0 0
  %1077 = vmatprep.subr.bf16.mxu0 0
  %1078 = vmatpush1.bf16.msra.mxu0 0
  %1079 = vmatprep.mubr.bf16.mxu0 0
  %1080 = vmatmul.mubr.bf16.gmra.mrb[0].mxu0 %v827
  %v1081 = vpop.f32.mrb[0].mxu0
  %v1082 = vadd.f32 %v460, %v1081
  %v1083 = vpop.f32.mrb[0].mxu0
  %v1084 = vpop.f32.mrb[0].mxu0
  %v1085 = vpop.f32.mrb[0].mxu0
  %1086 = vdwg.mxu0
  %v1087 = vmul.f32 %v979, %v1082
  %v1088 = vadd.f32 %v998, %v1087
  %v1089 = vtanh.pop %v1088
  %v1090 = vsub.f32 1.0, %v981
  %v1091 = vmul.f32 %v1090, %v1089
  %v1092 = vmul.f32 %v981, %v824
  %v1093 = vadd.f32 %v1091, %v1092
  %s1094 = scalar_lea.vmem %s7, 16
  %1095 = vst [vmem:[%s1094] sm:$0xff] %v1093
  %v1096 = vpack.c.bf16 %v1093, %v1093
  %s1097 = scalar_lea.vmem [#allocation2], 72
  %v1098 = vld [vmem:[%s1097] sm:$0xff]
  %v1099 = vld [vmem:[%s1097 + $0x8] sm:$0xff]
  %v1100 = vld [vmem:[%s3] sm:$0xff]
  %v1101 = vld [vmem:[%s3 + $0x8] sm:$0xff]
  %v1102 = vld [vmem:[%s3 + $0x10] sm:$0xff]
  %v1103 = vld [vmem:[%s3 + $0x18] sm:$0xff]
  %v1104 = vld [vmem:[%s3 + $0x20] sm:$0xff]
  %v1105 = vld [vmem:[%s3 + $0x28] sm:$0xff]
  %v1106 = vld [vmem:[%s3 + $0x30] sm:$0xff]
  %v1107 = vld [vmem:[%s3 + $0x38] sm:$0xff]
  %v1108 = vld [vmem:[%s3 + $0x40] sm:$0xff]
  %v1109 = vld [vmem:[%s3 + $0x48] sm:$0xff]
  %v1110 = vld [vmem:[%s3 + $0x50] sm:$0xff]
  %v1111 = vld [vmem:[%s3 + $0x58] sm:$0xff]
  %v1112 = vld [vmem:[%s3 + $0x60] sm:$0xff]
  %v1113 = vld [vmem:[%s3 + $0x68] sm:$0xff]
  %v1114 = vld [vmem:[%s3 + $0x70] sm:$0xff]
  %v1115 = vld [vmem:[%s3 + $0x78] sm:$0xff]
  %v1132 = vunpack.c.l.b16 %v1100
  %v1133 = vunpack.c.h.b16 %v1100
  %v1134 = vunpack.c.l.b16 %v1101
  %v1135 = vunpack.c.h.b16 %v1101
  %v1136 = vunpack.c.l.b16 %v1102
  %v1137 = vunpack.c.h.b16 %v1102
  %v1138 = vunpack.c.l.b16 %v1103
  %v1139 = vunpack.c.h.b16 %v1103
  %v1140 = vunpack.c.l.b16 %v1104
  %v1141 = vunpack.c.h.b16 %v1104
  %v1142 = vunpack.c.l.b16 %v1105
  %v1143 = vunpack.c.h.b16 %v1105
  %v1144 = vunpack.c.l.b16 %v1106
  %v1145 = vunpack.c.h.b16 %v1106
  %v1146 = vunpack.c.l.b16 %v1107
  %v1147 = vunpack.c.h.b16 %v1107
  %v1148 = vunpack.c.l.b16 %v1108
  %v1149 = vunpack.c.h.b16 %v1108
  %v1150 = vunpack.c.l.b16 %v1109
  %v1151 = vunpack.c.h.b16 %v1109
  %v1152 = vunpack.c.l.b16 %v1110
  %v1153 = vunpack.c.h.b16 %v1110
  %v1154 = vunpack.c.l.b16 %v1111
  %v1155 = vunpack.c.h.b16 %v1111
  %v1156 = vunpack.c.l.b16 %v1112
  %v1157 = vunpack.c.h.b16 %v1112
  %v1158 = vunpack.c.l.b16 %v1113
  %v1159 = vunpack.c.h.b16 %v1113
  %v1160 = vunpack.c.l.b16 %v1114
  %v1161 = vunpack.c.h.b16 %v1114
  %v1162 = vunpack.c.l.b16 %v1115
  %v1163 = vunpack.c.h.b16 %v1115
  %v1164 = vpack.c.b16 %v1134, %v1132
  %v1165 = vpack.c.b16 %v1135, %v1133
  %v1166 = vpack.c.b16 %v1138, %v1136
  %v1167 = vpack.c.b16 %v1139, %v1137
  %v1168 = vpack.c.b16 %v1142, %v1140
  %v1169 = vpack.c.b16 %v1143, %v1141
  %v1170 = vpack.c.b16 %v1146, %v1144
  %v1171 = vpack.c.b16 %v1147, %v1145
  %v1172 = vpack.c.b16 %v1150, %v1148
  %v1173 = vpack.c.b16 %v1151, %v1149
  %v1174 = vpack.c.b16 %v1154, %v1152
  %v1175 = vpack.c.b16 %v1155, %v1153
  %v1176 = vpack.c.b16 %v1158, %v1156
  %v1177 = vpack.c.b16 %v1159, %v1157
  %v1178 = vpack.c.b16 %v1162, %v1160
  %v1179 = vpack.c.b16 %v1163, %v1161
  %1196 = vmatprep.subr.bf16.mxu0 %v1165
  %1197 = vmatpush1.bf16.msra.mxu0 %v1164
  %1198 = vmatprep.subr.bf16.mxu0 %v1167
  %1199 = vmatpush1.bf16.msra.mxu0 %v1166
  %1200 = vmatprep.subr.bf16.mxu0 %v1169
  %1201 = vmatpush1.bf16.msra.mxu0 %v1168
  %1202 = vmatprep.subr.bf16.mxu0 %v1171
  %1203 = vmatpush1.bf16.msra.mxu0 %v1170
  %1204 = vmatprep.subr.bf16.mxu0 %v1173
  %1205 = vmatpush1.bf16.msra.mxu0 %v1172
  %1206 = vmatprep.subr.bf16.mxu0 %v1175
  %1207 = vmatpush1.bf16.msra.mxu0 %v1174
  %1208 = vmatprep.subr.bf16.mxu0 %v1177
  %1209 = vmatpush1.bf16.msra.mxu0 %v1176
  %1210 = vmatprep.subr.bf16.mxu0 %v1179
  %1211 = vmatpush1.bf16.msra.mxu0 %v1178
  %1212 = vmatprep.subr.bf16.mxu0 0
  %1213 = vmatpush1.bf16.msra.mxu0 0
  %1214 = vmatprep.subr.bf16.mxu0 0
  %1215 = vmatpush1.bf16.msra.mxu0 0
  %1216 = vmatprep.subr.bf16.mxu0 0
  %1217 = vmatpush1.bf16.msra.mxu0 0
  %1218 = vmatprep.subr.bf16.mxu0 0
  %1219 = vmatpush1.bf16.msra.mxu0 0
  %1220 = vmatprep.subr.bf16.mxu0 0
  %1221 = vmatpush1.bf16.msra.mxu0 0
  %1222 = vmatprep.subr.bf16.mxu0 0
  %1223 = vmatpush1.bf16.msra.mxu0 0
  %1224 = vmatprep.subr.bf16.mxu0 0
  %1225 = vmatpush1.bf16.msra.mxu0 0
  %1226 = vmatprep.subr.bf16.mxu0 0
  %1227 = vmatpush1.bf16.msra.mxu0 0
  %1228 = vmatprep.mubr.bf16.mxu0 0
  %1229 = vmatmul.mubr.bf16.gmra.mrb[0].mxu0 %v1096
  %v1230 = vpop.f32.mrb[0].mxu0
  %v1231 = vadd.f32 0.0, %v1230
  %v1232 = vpop.f32.mrb[0].mxu0
  %v1233 = vadd.f32 0.0, %v1232
  %v1234 = vpop.f32.mrb[0].mxu0
  %v1235 = vpop.f32.mrb[0].mxu0
  %1236 = vdwg.mxu0
  %v1237 = vadd.f32 %v1098, %v1231
  %v1238 = vadd.f32 %v1099, %v1233
  %v1239 = vxor.u32 %v1237, 2147483648
  %v1240 = vxor.u32 %v1238, 2147483648
  %v1241 = vmul.f32 %v1239, 1.442695
  %v1242 = vpow.pop %v1241
  %v1243 = vmul.f32 %v1240, 1.442695
  %v1244 = vpow.pop %v1243
  %v1245 = vadd.f32 %v1242, 1.0
  %v1246 = vadd.f32 %v1244, 1.0
  %v1247 = vrcp.pop %v1245
  %v1248 = vmul.f32 1.0, %v1247
  %v1249 = vrcp.pop %v1246
  %v1250 = vmul.f32 1.0, %v1249
  %v1251 = vld [vmem:[%s4] sm:$0xf]
  %v1252 = vld [vmem:[%s4 + $0x4] sm:$0xf]
  %v1253 = vld [vmem:[%s4 + $0x8] sm:$0xf]
  %v1254 = vld [vmem:[%s4 + $0xc] sm:$0xf]
  %v1255 = vld [vmem:[%s4 + $0x10] sm:$0xf]
  %v1256 = vld [vmem:[%s4 + $0x14] sm:$0xf]
  %v1257 = vld [vmem:[%s4 + $0x18] sm:$0xf]
  %v1258 = vld [vmem:[%s4 + $0x1c] sm:$0xf]
  %v1259 = vld [vmem:[%s4 + $0x20] sm:$0xf]
  %v1260 = vld [vmem:[%s4 + $0x24] sm:$0xf]
  %v1261 = vld [vmem:[%s4 + $0x28] sm:$0xf]
  %v1262 = vld [vmem:[%s4 + $0x2c] sm:$0xf]
  %v1263 = vld [vmem:[%s4 + $0x30] sm:$0xf]
  %v1264 = vld [vmem:[%s4 + $0x34] sm:$0xf]
  %v1265 = vld [vmem:[%s4 + $0x38] sm:$0xf]
  %v1266 = vld [vmem:[%s4 + $0x3c] sm:$0xf]
  %v1267 = vld [vmem:[%s1097 + $0x10] sm:$0xff]
  %v1284 = vunpack.c.l.b16 %v1251
  %v1285 = vunpack.c.l.b16 %v1252
  %v1286 = vunpack.c.l.b16 %v1253
  %v1287 = vunpack.c.l.b16 %v1254
  %v1288 = vunpack.c.l.b16 %v1255
  %v1289 = vunpack.c.l.b16 %v1256
  %v1290 = vunpack.c.l.b16 %v1257
  %v1291 = vunpack.c.l.b16 %v1258
  %v1292 = vunpack.c.l.b16 %v1259
  %v1293 = vunpack.c.l.b16 %v1260
  %v1294 = vunpack.c.l.b16 %v1261
  %v1295 = vunpack.c.l.b16 %v1262
  %v1296 = vunpack.c.l.b16 %v1263
  %v1297 = vunpack.c.l.b16 %v1264
  %v1298 = vunpack.c.l.b16 %v1265
  %v1299 = vunpack.c.l.b16 %v1266
  %v1300 = vpack.c.b16 %v1285, %v1284
  %v1301 = vpack.c.b16 %v1287, %v1286
  %v1302 = vpack.c.b16 %v1289, %v1288
  %v1303 = vpack.c.b16 %v1291, %v1290
  %v1304 = vpack.c.b16 %v1293, %v1292
  %v1305 = vpack.c.b16 %v1295, %v1294
  %v1306 = vpack.c.b16 %v1297, %v1296
  %v1307 = vpack.c.b16 %v1299, %v1298
  %1316 = vmatprep.subr.bf16.mxu0 0
  %1317 = vmatpush1.bf16.msra.mxu0 %v1300
  %1318 = vmatprep.subr.bf16.mxu0 0
  %1319 = vmatpush1.bf16.msra.mxu0 %v1301
  %1320 = vmatprep.subr.bf16.mxu0 0
  %1321 = vmatpush1.bf16.msra.mxu0 %v1302
  %1322 = vmatprep.subr.bf16.mxu0 0
  %1323 = vmatpush1.bf16.msra.mxu0 %v1303
  %1324 = vmatprep.subr.bf16.mxu0 0
  %1325 = vmatpush1.bf16.msra.mxu0 %v1304
  %1326 = vmatprep.subr.bf16.mxu0 0
  %1327 = vmatpush1.bf16.msra.mxu0 %v1305
  %1328 = vmatprep.subr.bf16.mxu0 0
  %1329 = vmatpush1.bf16.msra.mxu0 %v1306
  %1330 = vmatprep.subr.bf16.mxu0 0
  %1331 = vmatpush1.bf16.msra.mxu0 %v1307
  %1332 = vmatprep.subr.bf16.mxu0 0
  %1333 = vmatpush1.bf16.msra.mxu0 0
  %1334 = vmatprep.subr.bf16.mxu0 0
  %1335 = vmatpush1.bf16.msra.mxu0 0
  %1336 = vmatprep.subr.bf16.mxu0 0
  %1337 = vmatpush1.bf16.msra.mxu0 0
  %1338 = vmatprep.subr.bf16.mxu0 0
  %1339 = vmatpush1.bf16.msra.mxu0 0
  %1340 = vmatprep.subr.bf16.mxu0 0
  %1341 = vmatpush1.bf16.msra.mxu0 0
  %1342 = vmatprep.subr.bf16.mxu0 0
  %1343 = vmatpush1.bf16.msra.mxu0 0
  %1344 = vmatprep.subr.bf16.mxu0 0
  %1345 = vmatpush1.bf16.msra.mxu0 0
  %1346 = vmatprep.subr.bf16.mxu0 0
  %1347 = vmatpush1.bf16.msra.mxu0 0
  %1348 = vmatprep.mubr.bf16.mxu0 0
  %1349 = vmatmul.mubr.bf16.gmra.mrb[0].mxu0 %v1096
  %v1350 = vpop.f32.mrb[0].mxu0
  %v1351 = vadd.f32 %v460, %v1350
  %v1352 = vpop.f32.mrb[0].mxu0
  %v1353 = vpop.f32.mrb[0].mxu0
  %v1354 = vpop.f32.mrb[0].mxu0
  %1355 = vdwg.mxu0
  %v1356 = vmul.f32 %v1248, %v1351
  %v1357 = vadd.f32 %v1267, %v1356
  %v1358 = vtanh.pop %v1357
  %v1359 = vsub.f32 1.0, %v1250
  %v1360 = vmul.f32 %v1359, %v1358
  %v1361 = vmul.f32 %v1250, %v1093
  %v1362 = vadd.f32 %v1360, %v1361
  %s1363 = scalar_lea.vmem %s7, 24
  %1364 = vst [vmem:[%s1363] sm:$0xff] %v1362
  %v1365 = vpack.c.bf16 %v1362, %v1362
  %s1366 = scalar_lea.vmem [#allocation2], 96
  %v1367 = vld [vmem:[%s1366] sm:$0xff]
  %v1368 = vld [vmem:[%s1366 + $0x8] sm:$0xff]
  %v1369 = vld [vmem:[%s3] sm:$0xff]
  %v1370 = vld [vmem:[%s3 + $0x8] sm:$0xff]
  %v1371 = vld [vmem:[%s3 + $0x10] sm:$0xff]
  %v1372 = vld [vmem:[%s3 + $0x18] sm:$0xff]
  %v1373 = vld [vmem:[%s3 + $0x20] sm:$0xff]
  %v1374 = vld [vmem:[%s3 + $0x28] sm:$0xff]
  %v1375 = vld [vmem:[%s3 + $0x30] sm:$0xff]
  %v1376 = vld [vmem:[%s3 + $0x38] sm:$0xff]
  %v1377 = vld [vmem:[%s3 + $0x40] sm:$0xff]
  %v1378 = vld [vmem:[%s3 + $0x48] sm:$0xff]
  %v1379 = vld [vmem:[%s3 + $0x50] sm:$0xff]
  %v1380 = vld [vmem:[%s3 + $0x58] sm:$0xff]
  %v1381 = vld [vmem:[%s3 + $0x60] sm:$0xff]
  %v1382 = vld [vmem:[%s3 + $0x68] sm:$0xff]
  %v1383 = vld [vmem:[%s3 + $0x70] sm:$0xff]
  %v1384 = vld [vmem:[%s3 + $0x78] sm:$0xff]
  %v1401 = vunpack.c.l.b16 %v1369
  %v1402 = vunpack.c.h.b16 %v1369
  %v1403 = vunpack.c.l.b16 %v1370
  %v1404 = vunpack.c.h.b16 %v1370
  %v1405 = vunpack.c.l.b16 %v1371
  %v1406 = vunpack.c.h.b16 %v1371
  %v1407 = vunpack.c.l.b16 %v1372
  %v1408 = vunpack.c.h.b16 %v1372
  %v1409 = vunpack.c.l.b16 %v1373
  %v1410 = vunpack.c.h.b16 %v1373
  %v1411 = vunpack.c.l.b16 %v1374
  %v1412 = vunpack.c.h.b16 %v1374
  %v1413 = vunpack.c.l.b16 %v1375
  %v1414 = vunpack.c.h.b16 %v1375
  %v1415 = vunpack.c.l.b16 %v1376
  %v1416 = vunpack.c.h.b16 %v1376
  %v1417 = vunpack.c.l.b16 %v1377
  %v1418 = vunpack.c.h.b16 %v1377
  %v1419 = vunpack.c.l.b16 %v1378
  %v1420 = vunpack.c.h.b16 %v1378
  %v1421 = vunpack.c.l.b16 %v1379
  %v1422 = vunpack.c.h.b16 %v1379
  %v1423 = vunpack.c.l.b16 %v1380
  %v1424 = vunpack.c.h.b16 %v1380
  %v1425 = vunpack.c.l.b16 %v1381
  %v1426 = vunpack.c.h.b16 %v1381
  %v1427 = vunpack.c.l.b16 %v1382
  %v1428 = vunpack.c.h.b16 %v1382
  %v1429 = vunpack.c.l.b16 %v1383
  %v1430 = vunpack.c.h.b16 %v1383
  %v1431 = vunpack.c.l.b16 %v1384
  %v1432 = vunpack.c.h.b16 %v1384
  %v1433 = vpack.c.b16 %v1403, %v1401
  %v1434 = vpack.c.b16 %v1404, %v1402
  %v1435 = vpack.c.b16 %v1407, %v1405
  %v1436 = vpack.c.b16 %v1408, %v1406
  %v1437 = vpack.c.b16 %v1411, %v1409
  %v1438 = vpack.c.b16 %v1412, %v1410
  %v1439 = vpack.c.b16 %v1415, %v1413
  %v1440 = vpack.c.b16 %v1416, %v1414
  %v1441 = vpack.c.b16 %v1419, %v1417
  %v1442 = vpack.c.b16 %v1420, %v1418
  %v1443 = vpack.c.b16 %v1423, %v1421
  %v1444 = vpack.c.b16 %v1424, %v1422
  %v1445 = vpack.c.b16 %v1427, %v1425
  %v1446 = vpack.c.b16 %v1428, %v1426
  %v1447 = vpack.c.b16 %v1431, %v1429
  %v1448 = vpack.c.b16 %v1432, %v1430
  %1465 = vmatprep.subr.bf16.mxu0 %v1434
  %1466 = vmatpush1.bf16.msra.mxu0 %v1433
  %1467 = vmatprep.subr.bf16.mxu0 %v1436
  %1468 = vmatpush1.bf16.msra.mxu0 %v1435
  %1469 = vmatprep.subr.bf16.mxu0 %v1438
  %1470 = vmatpush1.bf16.msra.mxu0 %v1437
  %1471 = vmatprep.subr.bf16.mxu0 %v1440
  %1472 = vmatpush1.bf16.msra.mxu0 %v1439
  %1473 = vmatprep.subr.bf16.mxu0 %v1442
  %1474 = vmatpush1.bf16.msra.mxu0 %v1441
  %1475 = vmatprep.subr.bf16.mxu0 %v1444
  %1476 = vmatpush1.bf16.msra.mxu0 %v1443
  %1477 = vmatprep.subr.bf16.mxu0 %v1446
  %1478 = vmatpush1.bf16.msra.mxu0 %v1445
  %1479 = vmatprep.subr.bf16.mxu0 %v1448
  %1480 = vmatpush1.bf16.msra.mxu0 %v1447
  %1481 = vmatprep.subr.bf16.mxu0 0
  %1482 = vmatpush1.bf16.msra.mxu0 0
  %1483 = vmatprep.subr.bf16.mxu0 0
  %1484 = vmatpush1.bf16.msra.mxu0 0
  %1485 = vmatprep.subr.bf16.mxu0 0
  %1486 = vmatpush1.bf16.msra.mxu0 0
  %1487 = vmatprep.subr.bf16.mxu0 0
  %1488 = vmatpush1.bf16.msra.mxu0 0
  %1489 = vmatprep.subr.bf16.mxu0 0
  %1490 = vmatpush1.bf16.msra.mxu0 0
  %1491 = vmatprep.subr.bf16.mxu0 0
  %1492 = vmatpush1.bf16.msra.mxu0 0
  %1493 = vmatprep.subr.bf16.mxu0 0
  %1494 = vmatpush1.bf16.msra.mxu0 0
  %1495 = vmatprep.subr.bf16.mxu0 0
  %1496 = vmatpush1.bf16.msra.mxu0 0
  %1497 = vmatprep.mubr.bf16.mxu0 0
  %1498 = vmatmul.mubr.bf16.gmra.mrb[0].mxu0 %v1365
  %v1499 = vpop.f32.mrb[0].mxu0
  %v1500 = vadd.f32 0.0, %v1499
  %v1501 = vpop.f32.mrb[0].mxu0
  %v1502 = vadd.f32 0.0, %v1501
  %v1503 = vpop.f32.mrb[0].mxu0
  %v1504 = vpop.f32.mrb[0].mxu0
  %1505 = vdwg.mxu0
  %v1506 = vadd.f32 %v1367, %v1500
  %v1507 = vadd.f32 %v1368, %v1502
  %v1508 = vxor.u32 %v1506, 2147483648
  %v1509 = vxor.u32 %v1507, 2147483648
  %v1510 = vmul.f32 %v1508, 1.442695
  %v1511 = vpow.pop %v1510
  %v1512 = vmul.f32 %v1509, 1.442695
  %v1513 = vpow.pop %v1512
  %v1514 = vadd.f32 %v1511, 1.0
  %v1515 = vadd.f32 %v1513, 1.0
  %v1516 = vrcp.pop %v1514
  %v1517 = vmul.f32 1.0, %v1516
  %v1518 = vrcp.pop %v1515
  %v1519 = vmul.f32 1.0, %v1518
  %v1520 = vld [vmem:[%s4] sm:$0xf]
  %v1521 = vld [vmem:[%s4 + $0x4] sm:$0xf]
  %v1522 = vld [vmem:[%s4 + $0x8] sm:$0xf]
  %v1523 = vld [vmem:[%s4 + $0xc] sm:$0xf]
  %v1524 = vld [vmem:[%s4 + $0x10] sm:$0xf]
  %v1525 = vld [vmem:[%s4 + $0x14] sm:$0xf]
  %v1526 = vld [vmem:[%s4 + $0x18] sm:$0xf]
  %v1527 = vld [vmem:[%s4 + $0x1c] sm:$0xf]
  %v1528 = vld [vmem:[%s4 + $0x20] sm:$0xf]
  %v1529 = vld [vmem:[%s4 + $0x24] sm:$0xf]
  %v1530 = vld [vmem:[%s4 + $0x28] sm:$0xf]
  %v1531 = vld [vmem:[%s4 + $0x2c] sm:$0xf]
  %v1532 = vld [vmem:[%s4 + $0x30] sm:$0xf]
  %v1533 = vld [vmem:[%s4 + $0x34] sm:$0xf]
  %v1534 = vld [vmem:[%s4 + $0x38] sm:$0xf]
  %v1535 = vld [vmem:[%s4 + $0x3c] sm:$0xf]
  %v1536 = vld [vmem:[%s1366 + $0x10] sm:$0xff]
  %v1553 = vunpack.c.l.b16 %v1520
  %v1554 = vunpack.c.l.b16 %v1521
  %v1555 = vunpack.c.l.b16 %v1522
  %v1556 = vunpack.c.l.b16 %v1523
  %v1557 = vunpack.c.l.b16 %v1524
  %v1558 = vunpack.c.l.b16 %v1525
  %v1559 = vunpack.c.l.b16 %v1526
  %v1560 = vunpack.c.l.b16 %v1527
  %v1561 = vunpack.c.l.b16 %v1528
  %v1562 = vunpack.c.l.b16 %v1529
  %v1563 = vunpack.c.l.b16 %v1530
  %v1564 = vunpack.c.l.b16 %v1531
  %v1565 = vunpack.c.l.b16 %v1532
  %v1566 = vunpack.c.l.b16 %v1533
  %v1567 = vunpack.c.l.b16 %v1534
  %v1568 = vunpack.c.l.b16 %v1535
  %v1569 = vpack.c.b16 %v1554, %v1553
  %v1570 = vpack.c.b16 %v1556, %v1555
  %v1571 = vpack.c.b16 %v1558, %v1557
  %v1572 = vpack.c.b16 %v1560, %v1559
  %v1573 = vpack.c.b16 %v1562, %v1561
  %v1574 = vpack.c.b16 %v1564, %v1563
  %v1575 = vpack.c.b16 %v1566, %v1565
  %v1576 = vpack.c.b16 %v1568, %v1567
  %1585 = vmatprep.subr.bf16.mxu0 0
  %1586 = vmatpush1.bf16.msra.mxu0 %v1569
  %1587 = vmatprep.subr.bf16.mxu0 0
  %1588 = vmatpush1.bf16.msra.mxu0 %v1570
  %1589 = vmatprep.subr.bf16.mxu0 0
  %1590 = vmatpush1.bf16.msra.mxu0 %v1571
  %1591 = vmatprep.subr.bf16.mxu0 0
  %1592 = vmatpush1.bf16.msra.mxu0 %v1572
  %1593 = vmatprep.subr.bf16.mxu0 0
  %1594 = vmatpush1.bf16.msra.mxu0 %v1573
  %1595 = vmatprep.subr.bf16.mxu0 0
  %1596 = vmatpush1.bf16.msra.mxu0 %v1574
  %1597 = vmatprep.subr.bf16.mxu0 0
  %1598 = vmatpush1.bf16.msra.mxu0 %v1575
  %1599 = vmatprep.subr.bf16.mxu0 0
  %1600 = vmatpush1.bf16.msra.mxu0 %v1576
  %1601 = vmatprep.subr.bf16.mxu0 0
  %1602 = vmatpush1.bf16.msra.mxu0 0
  %1603 = vmatprep.subr.bf16.mxu0 0
  %1604 = vmatpush1.bf16.msra.mxu0 0
  %1605 = vmatprep.subr.bf16.mxu0 0
  %1606 = vmatpush1.bf16.msra.mxu0 0
  %1607 = vmatprep.subr.bf16.mxu0 0
  %1608 = vmatpush1.bf16.msra.mxu0 0
  %1609 = vmatprep.subr.bf16.mxu0 0
  %1610 = vmatpush1.bf16.msra.mxu0 0
  %1611 = vmatprep.subr.bf16.mxu0 0
  %1612 = vmatpush1.bf16.msra.mxu0 0
  %1613 = vmatprep.subr.bf16.mxu0 0
  %1614 = vmatpush1.bf16.msra.mxu0 0
  %1615 = vmatprep.subr.bf16.mxu0 0
  %1616 = vmatpush1.bf16.msra.mxu0 0
  %1617 = vmatprep.mubr.bf16.mxu0 0
  %1618 = vmatmul.mubr.bf16.gmra.mrb[0].mxu0 %v1365
  %v1619 = vpop.f32.mrb[0].mxu0
  %v1620 = vadd.f32 %v460, %v1619
  %v1621 = vpop.f32.mrb[0].mxu0
  %v1622 = vpop.f32.mrb[0].mxu0
  %v1623 = vpop.f32.mrb[0].mxu0
  %1624 = vdwg.mxu0
  %v1625 = vmul.f32 %v1517, %v1620
  %v1626 = vadd.f32 %v1536, %v1625
  %v1627 = vtanh.pop %v1626
  %v1628 = vsub.f32 1.0, %v1519
  %v1629 = vmul.f32 %v1628, %v1627
  %v1630 = vmul.f32 %v1519, %v1362
  %v1631 = vadd.f32 %v1629, %v1630
  %s1632 = scalar_lea.vmem %s7, 32
  %1633 = vst [vmem:[%s1632] sm:$0xff] %v1631
  %v1634 = vpack.c.bf16 %v1631, %v1631
  %s1635 = scalar_lea.vmem [#allocation2], 120
  %v1636 = vld [vmem:[%s1635] sm:$0xff]
  %v1637 = vld [vmem:[%s1635 + $0x8] sm:$0xff]
  %v1638 = vld [vmem:[%s3] sm:$0xff]
  %v1639 = vld [vmem:[%s3 + $0x8] sm:$0xff]
  %v1640 = vld [vmem:[%s3 + $0x10] sm:$0xff]
  %v1641 = vld [vmem:[%s3 + $0x18] sm:$0xff]
  %v1642 = vld [vmem:[%s3 + $0x20] sm:$0xff]
  %v1643 = vld [vmem:[%s3 + $0x28] sm:$0xff]
  %v1644 = vld [vmem:[%s3 + $0x30] sm:$0xff]
  %v1645 = vld [vmem:[%s3 + $0x38] sm:$0xff]
  %v1646 = vld [vmem:[%s3 + $0x40] sm:$0xff]
  %v1647 = vld [vmem:[%s3 + $0x48] sm:$0xff]
  %v1648 = vld [vmem:[%s3 + $0x50] sm:$0xff]
  %v1649 = vld [vmem:[%s3 + $0x58] sm:$0xff]
  %v1650 = vld [vmem:[%s3 + $0x60] sm:$0xff]
  %v1651 = vld [vmem:[%s3 + $0x68] sm:$0xff]
  %v1652 = vld [vmem:[%s3 + $0x70] sm:$0xff]
  %v1653 = vld [vmem:[%s3 + $0x78] sm:$0xff]
  %v1670 = vunpack.c.l.b16 %v1638
  %v1671 = vunpack.c.h.b16 %v1638
  %v1672 = vunpack.c.l.b16 %v1639
  %v1673 = vunpack.c.h.b16 %v1639
  %v1674 = vunpack.c.l.b16 %v1640
  %v1675 = vunpack.c.h.b16 %v1640
  %v1676 = vunpack.c.l.b16 %v1641
  %v1677 = vunpack.c.h.b16 %v1641
  %v1678 = vunpack.c.l.b16 %v1642
  %v1679 = vunpack.c.h.b16 %v1642
  %v1680 = vunpack.c.l.b16 %v1643
  %v1681 = vunpack.c.h.b16 %v1643
  %v1682 = vunpack.c.l.b16 %v1644
  %v1683 = vunpack.c.h.b16 %v1644
  %v1684 = vunpack.c.l.b16 %v1645
  %v1685 = vunpack.c.h.b16 %v1645
  %v1686 = vunpack.c.l.b16 %v1646
  %v1687 = vunpack.c.h.b16 %v1646
  %v1688 = vunpack.c.l.b16 %v1647
  %v1689 = vunpack.c.h.b16 %v1647
  %v1690 = vunpack.c.l.b16 %v1648
  %v1691 = vunpack.c.h.b16 %v1648
  %v1692 = vunpack.c.l.b16 %v1649
  %v1693 = vunpack.c.h.b16 %v1649
  %v1694 = vunpack.c.l.b16 %v1650
  %v1695 = vunpack.c.h.b16 %v1650
  %v1696 = vunpack.c.l.b16 %v1651
  %v1697 = vunpack.c.h.b16 %v1651
  %v1698 = vunpack.c.l.b16 %v1652
  %v1699 = vunpack.c.h.b16 %v1652
  %v1700 = vunpack.c.l.b16 %v1653
  %v1701 = vunpack.c.h.b16 %v1653
  %v1702 = vpack.c.b16 %v1672, %v1670
  %v1703 = vpack.c.b16 %v1673, %v1671
  %v1704 = vpack.c.b16 %v1676, %v1674
  %v1705 = vpack.c.b16 %v1677, %v1675
  %v1706 = vpack.c.b16 %v1680, %v1678
  %v1707 = vpack.c.b16 %v1681, %v1679
  %v1708 = vpack.c.b16 %v1684, %v1682
  %v1709 = vpack.c.b16 %v1685, %v1683
  %v1710 = vpack.c.b16 %v1688, %v1686
  %v1711 = vpack.c.b16 %v1689, %v1687
  %v1712 = vpack.c.b16 %v1692, %v1690
  %v1713 = vpack.c.b16 %v1693, %v1691
  %v1714 = vpack.c.b16 %v1696, %v1694
  %v1715 = vpack.c.b16 %v1697, %v1695
  %v1716 = vpack.c.b16 %v1700, %v1698
  %v1717 = vpack.c.b16 %v1701, %v1699
  %1734 = vmatprep.subr.bf16.mxu0 %v1703
  %1735 = vmatpush1.bf16.msra.mxu0 %v1702
  %1736 = vmatprep.subr.bf16.mxu0 %v1705
  %1737 = vmatpush1.bf16.msra.mxu0 %v1704
  %1738 = vmatprep.subr.bf16.mxu0 %v1707
  %1739 = vmatpush1.bf16.msra.mxu0 %v1706
  %1740 = vmatprep.subr.bf16.mxu0 %v1709
  %1741 = vmatpush1.bf16.msra.mxu0 %v1708
  %1742 = vmatprep.subr.bf16.mxu0 %v1711
  %1743 = vmatpush1.bf16.msra.mxu0 %v1710
  %1744 = vmatprep.subr.bf16.mxu0 %v1713
  %1745 = vmatpush1.bf16.msra.mxu0 %v1712
  %1746 = vmatprep.subr.bf16.mxu0 %v1715
  %1747 = vmatpush1.bf16.msra.mxu0 %v1714
  %1748 = vmatprep.subr.bf16.mxu0 %v1717
  %1749 = vmatpush1.bf16.msra.mxu0 %v1716
  %1750 = vmatprep.subr.bf16.mxu0 0
  %1751 = vmatpush1.bf16.msra.mxu0 0
  %1752 = vmatprep.subr.bf16.mxu0 0
  %1753 = vmatpush1.bf16.msra.mxu0 0
  %1754 = vmatprep.subr.bf16.mxu0 0
  %1755 = vmatpush1.bf16.msra.mxu0 0
  %1756 = vmatprep.subr.bf16.mxu0 0
  %1757 = vmatpush1.bf16.msra.mxu0 0
  %1758 = vmatprep.subr.bf16.mxu0 0
  %1759 = vmatpush1.bf16.msra.mxu0 0
  %1760 = vmatprep.subr.bf16.mxu0 0
  %1761 = vmatpush1.bf16.msra.mxu0 0
  %1762 = vmatprep.subr.bf16.mxu0 0
  %1763 = vmatpush1.bf16.msra.mxu0 0
  %1764 = vmatprep.subr.bf16.mxu0 0
  %1765 = vmatpush1.bf16.msra.mxu0 0
  %1766 = vmatprep.mubr.bf16.mxu0 0
  %1767 = vmatmul.mubr.bf16.gmra.mrb[0].mxu0 %v1634
  %v1768 = vpop.f32.mrb[0].mxu0
  %v1769 = vadd.f32 0.0, %v1768
  %v1770 = vpop.f32.mrb[0].mxu0
  %v1771 = vadd.f32 0.0, %v1770
  %v1772 = vpop.f32.mrb[0].mxu0
  %v1773 = vpop.f32.mrb[0].mxu0
  %1774 = vdwg.mxu0
  %v1775 = vadd.f32 %v1636, %v1769
  %v1776 = vadd.f32 %v1637, %v1771
  %v1777 = vxor.u32 %v1775, 2147483648
  %v1778 = vxor.u32 %v1776, 2147483648
  %v1779 = vmul.f32 %v1777, 1.442695
  %v1780 = vpow.pop %v1779
  %v1781 = vmul.f32 %v1778, 1.442695
  %v1782 = vpow.pop %v1781
  %v1783 = vadd.f32 %v1780, 1.0
  %v1784 = vadd.f32 %v1782, 1.0
  %v1785 = vrcp.pop %v1783
  %v1786 = vmul.f32 1.0, %v1785
  %v1787 = vrcp.pop %v1784
  %v1788 = vmul.f32 1.0, %v1787
  %v1789 = vld [vmem:[%s4] sm:$0xf]
  %v1790 = vld [vmem:[%s4 + $0x4] sm:$0xf]
  %v1791 = vld [vmem:[%s4 + $0x8] sm:$0xf]
  %v1792 = vld [vmem:[%s4 + $0xc] sm:$0xf]
  %v1793 = vld [vmem:[%s4 + $0x10] sm:$0xf]
  %v1794 = vld [vmem:[%s4 + $0x14] sm:$0xf]
  %v1795 = vld [vmem:[%s4 + $0x18] sm:$0xf]
  %v1796 = vld [vmem:[%s4 + $0x1c] sm:$0xf]
  %v1797 = vld [vmem:[%s4 + $0x20] sm:$0xf]
  %v1798 = vld [vmem:[%s4 + $0x24] sm:$0xf]
  %v1799 = vld [vmem:[%s4 + $0x28] sm:$0xf]
  %v1800 = vld [vmem:[%s4 + $0x2c] sm:$0xf]
  %v1801 = vld [vmem:[%s4 + $0x30] sm:$0xf]
  %v1802 = vld [vmem:[%s4 + $0x34] sm:$0xf]
  %v1803 = vld [vmem:[%s4 + $0x38] sm:$0xf]
  %v1804 = vld [vmem:[%s4 + $0x3c] sm:$0xf]
  %v1805 = vld [vmem:[%s1635 + $0x10] sm:$0xff]
  %v1822 = vunpack.c.l.b16 %v1789
  %v1823 = vunpack.c.l.b16 %v1790
  %v1824 = vunpack.c.l.b16 %v1791
  %v1825 = vunpack.c.l.b16 %v1792
  %v1826 = vunpack.c.l.b16 %v1793
  %v1827 = vunpack.c.l.b16 %v1794
  %v1828 = vunpack.c.l.b16 %v1795
  %v1829 = vunpack.c.l.b16 %v1796
  %v1830 = vunpack.c.l.b16 %v1797
  %v1831 = vunpack.c.l.b16 %v1798
  %v1832 = vunpack.c.l.b16 %v1799
  %v1833 = vunpack.c.l.b16 %v1800
  %v1834 = vunpack.c.l.b16 %v1801
  %v1835 = vunpack.c.l.b16 %v1802
  %v1836 = vunpack.c.l.b16 %v1803
  %v1837 = vunpack.c.l.b16 %v1804
  %v1838 = vpack.c.b16 %v1823, %v1822
  %v1839 = vpack.c.b16 %v1825, %v1824
  %v1840 = vpack.c.b16 %v1827, %v1826
  %v1841 = vpack.c.b16 %v1829, %v1828
  %v1842 = vpack.c.b16 %v1831, %v1830
  %v1843 = vpack.c.b16 %v1833, %v1832
  %v1844 = vpack.c.b16 %v1835, %v1834
  %v1845 = vpack.c.b16 %v1837, %v1836
  %1854 = vmatprep.subr.bf16.mxu0 0
  %1855 = vmatpush1.bf16.msra.mxu0 %v1838
  %1856 = vmatprep.subr.bf16.mxu0 0
  %1857 = vmatpush1.bf16.msra.mxu0 %v1839
  %1858 = vmatprep.subr.bf16.mxu0 0
  %1859 = vmatpush1.bf16.msra.mxu0 %v1840
  %1860 = vmatprep.subr.bf16.mxu0 0
  %1861 = vmatpush1.bf16.msra.mxu0 %v1841
  %1862 = vmatprep.subr.bf16.mxu0 0
  %1863 = vmatpush1.bf16.msra.mxu0 %v1842
  %1864 = vmatprep.subr.bf16.mxu0 0
  %1865 = vmatpush1.bf16.msra.mxu0 %v1843
  %1866 = vmatprep.subr.bf16.mxu0 0
  %1867 = vmatpush1.bf16.msra.mxu0 %v1844
  %1868 = vmatprep.subr.bf16.mxu0 0
  %1869 = vmatpush1.bf16.msra.mxu0 %v1845
  %1870 = vmatprep.subr.bf16.mxu0 0
  %1871 = vmatpush1.bf16.msra.mxu0 0
  %1872 = vmatprep.subr.bf16.mxu0 0
  %1873 = vmatpush1.bf16.msra.mxu0 0
  %1874 = vmatprep.subr.bf16.mxu0 0
  %1875 = vmatpush1.bf16.msra.mxu0 0
  %1876 = vmatprep.subr.bf16.mxu0 0
  %1877 = vmatpush1.bf16.msra.mxu0 0
  %1878 = vmatprep.subr.bf16.mxu0 0
  %1879 = vmatpush1.bf16.msra.mxu0 0
  %1880 = vmatprep.subr.bf16.mxu0 0
  %1881 = vmatpush1.bf16.msra.mxu0 0
  %1882 = vmatprep.subr.bf16.mxu0 0
  %1883 = vmatpush1.bf16.msra.mxu0 0
  %1884 = vmatprep.subr.bf16.mxu0 0
  %1885 = vmatpush1.bf16.msra.mxu0 0
  %1886 = vmatprep.mubr.bf16.mxu0 0
  %1887 = vmatmul.mubr.bf16.gmra.mrb[0].mxu0 %v1634
  %v1888 = vpop.f32.mrb[0].mxu0
  %v1889 = vadd.f32 %v460, %v1888
  %v1890 = vpop.f32.mrb[0].mxu0
  %v1891 = vpop.f32.mrb[0].mxu0
  %v1892 = vpop.f32.mrb[0].mxu0
  %1893 = vdwg.mxu0
  %v1894 = vmul.f32 %v1786, %v1889
  %v1895 = vadd.f32 %v1805, %v1894
  %v1896 = vtanh.pop %v1895
  %v1897 = vsub.f32 1.0, %v1788
  %v1898 = vmul.f32 %v1897, %v1896
  %v1899 = vmul.f32 %v1788, %v1631
  %v1900 = vadd.f32 %v1898, %v1899
  %s1901 = scalar_lea.vmem %s7, 40
  %1902 = vst [vmem:[%s1901] sm:$0xff] %v1900
  %v1903 = vpack.c.bf16 %v1900, %v1900
  %s1904 = scalar_lea.vmem [#allocation2], 144
  %v1905 = vld [vmem:[%s1904] sm:$0xff]
  %v1906 = vld [vmem:[%s1904 + $0x8] sm:$0xff]
  %v1907 = vld [vmem:[%s3] sm:$0xff]
  %v1908 = vld [vmem:[%s3 + $0x8] sm:$0xff]
  %v1909 = vld [vmem:[%s3 + $0x10] sm:$0xff]
  %v1910 = vld [vmem:[%s3 + $0x18] sm:$0xff]
  %v1911 = vld [vmem:[%s3 + $0x20] sm:$0xff]
  %v1912 = vld [vmem:[%s3 + $0x28] sm:$0xff]
  %v1913 = vld [vmem:[%s3 + $0x30] sm:$0xff]
  %v1914 = vld [vmem:[%s3 + $0x38] sm:$0xff]
  %v1915 = vld [vmem:[%s3 + $0x40] sm:$0xff]
  %v1916 = vld [vmem:[%s3 + $0x48] sm:$0xff]
  %v1917 = vld [vmem:[%s3 + $0x50] sm:$0xff]
  %v1918 = vld [vmem:[%s3 + $0x58] sm:$0xff]
  %v1919 = vld [vmem:[%s3 + $0x60] sm:$0xff]
  %v1920 = vld [vmem:[%s3 + $0x68] sm:$0xff]
  %v1921 = vld [vmem:[%s3 + $0x70] sm:$0xff]
  %v1922 = vld [vmem:[%s3 + $0x78] sm:$0xff]
  %v1939 = vunpack.c.l.b16 %v1907
  %v1940 = vunpack.c.h.b16 %v1907
  %v1941 = vunpack.c.l.b16 %v1908
  %v1942 = vunpack.c.h.b16 %v1908
  %v1943 = vunpack.c.l.b16 %v1909
  %v1944 = vunpack.c.h.b16 %v1909
  %v1945 = vunpack.c.l.b16 %v1910
  %v1946 = vunpack.c.h.b16 %v1910
  %v1947 = vunpack.c.l.b16 %v1911
  %v1948 = vunpack.c.h.b16 %v1911
  %v1949 = vunpack.c.l.b16 %v1912
  %v1950 = vunpack.c.h.b16 %v1912
  %v1951 = vunpack.c.l.b16 %v1913
  %v1952 = vunpack.c.h.b16 %v1913
  %v1953 = vunpack.c.l.b16 %v1914
  %v1954 = vunpack.c.h.b16 %v1914
  %v1955 = vunpack.c.l.b16 %v1915
  %v1956 = vunpack.c.h.b16 %v1915
  %v1957 = vunpack.c.l.b16 %v1916
  %v1958 = vunpack.c.h.b16 %v1916
  %v1959 = vunpack.c.l.b16 %v1917
  %v1960 = vunpack.c.h.b16 %v1917
  %v1961 = vunpack.c.l.b16 %v1918
  %v1962 = vunpack.c.h.b16 %v1918
  %v1963 = vunpack.c.l.b16 %v1919
  %v1964 = vunpack.c.h.b16 %v1919
  %v1965 = vunpack.c.l.b16 %v1920
  %v1966 = vunpack.c.h.b16 %v1920
  %v1967 = vunpack.c.l.b16 %v1921
  %v1968 = vunpack.c.h.b16 %v1921
  %v1969 = vunpack.c.l.b16 %v1922
  %v1970 = vunpack.c.h.b16 %v1922
  %v1971 = vpack.c.b16 %v1941, %v1939
  %v1972 = vpack.c.b16 %v1942, %v1940
  %v1973 = vpack.c.b16 %v1945, %v1943
  %v1974 = vpack.c.b16 %v1946, %v1944
  %v1975 = vpack.c.b16 %v1949, %v1947
  %v1976 = vpack.c.b16 %v1950, %v1948
  %v1977 = vpack.c.b16 %v1953, %v1951
  %v1978 = vpack.c.b16 %v1954, %v1952
  %v1979 = vpack.c.b16 %v1957, %v1955
  %v1980 = vpack.c.b16 %v1958, %v1956
  %v1981 = vpack.c.b16 %v1961, %v1959
  %v1982 = vpack.c.b16 %v1962, %v1960
  %v1983 = vpack.c.b16 %v1965, %v1963
  %v1984 = vpack.c.b16 %v1966, %v1964
  %v1985 = vpack.c.b16 %v1969, %v1967
  %v1986 = vpack.c.b16 %v1970, %v1968
  %2003 = vmatprep.subr.bf16.mxu0 %v1972
  %2004 = vmatpush1.bf16.msra.mxu0 %v1971
  %2005 = vmatprep.subr.bf16.mxu0 %v1974
  %2006 = vmatpush1.bf16.msra.mxu0 %v1973
  %2007 = vmatprep.subr.bf16.mxu0 %v1976
  %2008 = vmatpush1.bf16.msra.mxu0 %v1975
  %2009 = vmatprep.subr.bf16.mxu0 %v1978
  %2010 = vmatpush1.bf16.msra.mxu0 %v1977
  %2011 = vmatprep.subr.bf16.mxu0 %v1980
  %2012 = vmatpush1.bf16.msra.mxu0 %v1979
  %2013 = vmatprep.subr.bf16.mxu0 %v1982
  %2014 = vmatpush1.bf16.msra.mxu0 %v1981
  %2015 = vmatprep.subr.bf16.mxu0 %v1984
  %2016 = vmatpush1.bf16.msra.mxu0 %v1983
  %2017 = vmatprep.subr.bf16.mxu0 %v1986
  %2018 = vmatpush1.bf16.msra.mxu0 %v1985
  %2019 = vmatprep.subr.bf16.mxu0 0
  %2020 = vmatpush1.bf16.msra.mxu0 0
  %2021 = vmatprep.subr.bf16.mxu0 0
  %2022 = vmatpush1.bf16.msra.mxu0 0
  %2023 = vmatprep.subr.bf16.mxu0 0
  %2024 = vmatpush1.bf16.msra.mxu0 0
  %2025 = vmatprep.subr.bf16.mxu0 0
  %2026 = vmatpush1.bf16.msra.mxu0 0
  %2027 = vmatprep.subr.bf16.mxu0 0
  %2028 = vmatpush1.bf16.msra.mxu0 0
  %2029 = vmatprep.subr.bf16.mxu0 0
  %2030 = vmatpush1.bf16.msra.mxu0 0
  %2031 = vmatprep.subr.bf16.mxu0 0
  %2032 = vmatpush1.bf16.msra.mxu0 0
  %2033 = vmatprep.subr.bf16.mxu0 0
  %2034 = vmatpush1.bf16.msra.mxu0 0
  %2035 = vmatprep.mubr.bf16.mxu0 0
  %2036 = vmatmul.mubr.bf16.gmra.mrb[0].mxu0 %v1903
  %v2037 = vpop.f32.mrb[0].mxu0
  %v2038 = vadd.f32 0.0, %v2037
  %v2039 = vpop.f32.mrb[0].mxu0
  %v2040 = vadd.f32 0.0, %v2039
  %v2041 = vpop.f32.mrb[0].mxu0
  %v2042 = vpop.f32.mrb[0].mxu0
  %2043 = vdwg.mxu0
  %v2044 = vadd.f32 %v1905, %v2038
  %v2045 = vadd.f32 %v1906, %v2040
  %v2046 = vxor.u32 %v2044, 2147483648
  %v2047 = vxor.u32 %v2045, 2147483648
  %v2048 = vmul.f32 %v2046, 1.442695
  %v2049 = vpow.pop %v2048
  %v2050 = vmul.f32 %v2047, 1.442695
  %v2051 = vpow.pop %v2050
  %v2052 = vadd.f32 %v2049, 1.0
  %v2053 = vadd.f32 %v2051, 1.0
  %v2054 = vrcp.pop %v2052
  %v2055 = vmul.f32 1.0, %v2054
  %v2056 = vrcp.pop %v2053
  %v2057 = vmul.f32 1.0, %v2056
  %v2058 = vld [vmem:[%s4] sm:$0xf]
  %v2059 = vld [vmem:[%s4 + $0x4] sm:$0xf]
  %v2060 = vld [vmem:[%s4 + $0x8] sm:$0xf]
  %v2061 = vld [vmem:[%s4 + $0xc] sm:$0xf]
  %v2062 = vld [vmem:[%s4 + $0x10] sm:$0xf]
  %v2063 = vld [vmem:[%s4 + $0x14] sm:$0xf]
  %v2064 = vld [vmem:[%s4 + $0x18] sm:$0xf]
  %v2065 = vld [vmem:[%s4 + $0x1c] sm:$0xf]
  %v2066 = vld [vmem:[%s4 + $0x20] sm:$0xf]
  %v2067 = vld [vmem:[%s4 + $0x24] sm:$0xf]
  %v2068 = vld [vmem:[%s4 + $0x28] sm:$0xf]
  %v2069 = vld [vmem:[%s4 + $0x2c] sm:$0xf]
  %v2070 = vld [vmem:[%s4 + $0x30] sm:$0xf]
  %v2071 = vld [vmem:[%s4 + $0x34] sm:$0xf]
  %v2072 = vld [vmem:[%s4 + $0x38] sm:$0xf]
  %v2073 = vld [vmem:[%s4 + $0x3c] sm:$0xf]
  %v2074 = vld [vmem:[%s1904 + $0x10] sm:$0xff]
  %v2091 = vunpack.c.l.b16 %v2058
  %v2092 = vunpack.c.l.b16 %v2059
  %v2093 = vunpack.c.l.b16 %v2060
  %v2094 = vunpack.c.l.b16 %v2061
  %v2095 = vunpack.c.l.b16 %v2062
  %v2096 = vunpack.c.l.b16 %v2063
  %v2097 = vunpack.c.l.b16 %v2064
  %v2098 = vunpack.c.l.b16 %v2065
  %v2099 = vunpack.c.l.b16 %v2066
  %v2100 = vunpack.c.l.b16 %v2067
  %v2101 = vunpack.c.l.b16 %v2068
  %v2102 = vunpack.c.l.b16 %v2069
  %v2103 = vunpack.c.l.b16 %v2070
  %v2104 = vunpack.c.l.b16 %v2071
  %v2105 = vunpack.c.l.b16 %v2072
  %v2106 = vunpack.c.l.b16 %v2073
  %v2107 = vpack.c.b16 %v2092, %v2091
  %v2108 = vpack.c.b16 %v2094, %v2093
  %v2109 = vpack.c.b16 %v2096, %v2095
  %v2110 = vpack.c.b16 %v2098, %v2097
  %v2111 = vpack.c.b16 %v2100, %v2099
  %v2112 = vpack.c.b16 %v2102, %v2101
  %v2113 = vpack.c.b16 %v2104, %v2103
  %v2114 = vpack.c.b16 %v2106, %v2105
  %2123 = vmatprep.subr.bf16.mxu0 0
  %2124 = vmatpush1.bf16.msra.mxu0 %v2107
  %2125 = vmatprep.subr.bf16.mxu0 0
  %2126 = vmatpush1.bf16.msra.mxu0 %v2108
  %2127 = vmatprep.subr.bf16.mxu0 0
  %2128 = vmatpush1.bf16.msra.mxu0 %v2109
  %2129 = vmatprep.subr.bf16.mxu0 0
  %2130 = vmatpush1.bf16.msra.mxu0 %v2110
  %2131 = vmatprep.subr.bf16.mxu0 0
  %2132 = vmatpush1.bf16.msra.mxu0 %v2111
  %2133 = vmatprep.subr.bf16.mxu0 0
  %2134 = vmatpush1.bf16.msra.mxu0 %v2112
  %2135 = vmatprep.subr.bf16.mxu0 0
  %2136 = vmatpush1.bf16.msra.mxu0 %v2113
  %2137 = vmatprep.subr.bf16.mxu0 0
  %2138 = vmatpush1.bf16.msra.mxu0 %v2114
  %2139 = vmatprep.subr.bf16.mxu0 0
  %2140 = vmatpush1.bf16.msra.mxu0 0
  %2141 = vmatprep.subr.bf16.mxu0 0
  %2142 = vmatpush1.bf16.msra.mxu0 0
  %2143 = vmatprep.subr.bf16.mxu0 0
  %2144 = vmatpush1.bf16.msra.mxu0 0
  %2145 = vmatprep.subr.bf16.mxu0 0
  %2146 = vmatpush1.bf16.msra.mxu0 0
  %2147 = vmatprep.subr.bf16.mxu0 0
  %2148 = vmatpush1.bf16.msra.mxu0 0
  %2149 = vmatprep.subr.bf16.mxu0 0
  %2150 = vmatpush1.bf16.msra.mxu0 0
  %2151 = vmatprep.subr.bf16.mxu0 0
  %2152 = vmatpush1.bf16.msra.mxu0 0
  %2153 = vmatprep.subr.bf16.mxu0 0
  %2154 = vmatpush1.bf16.msra.mxu0 0
  %2155 = vmatprep.mubr.bf16.mxu0 0
  %2156 = vmatmul.mubr.bf16.gmra.mrb[0].mxu0 %v1903
  %v2157 = vpop.f32.mrb[0].mxu0
  %v2158 = vadd.f32 %v460, %v2157
  %v2159 = vpop.f32.mrb[0].mxu0
  %v2160 = vpop.f32.mrb[0].mxu0
  %v2161 = vpop.f32.mrb[0].mxu0
  %2162 = vdwg.mxu0
  %v2163 = vmul.f32 %v2055, %v2158
  %v2164 = vadd.f32 %v2074, %v2163
  %v2165 = vtanh.pop %v2164
  %v2166 = vsub.f32 1.0, %v2057
  %v2167 = vmul.f32 %v2166, %v2165
  %v2168 = vmul.f32 %v2057, %v1900
  %v2169 = vadd.f32 %v2167, %v2168
  %s2170 = scalar_lea.vmem %s7, 48
  %2171 = vst [vmem:[%s2170] sm:$0xff] %v2169
  %v2172 = vpack.c.bf16 %v2169, %v2169
  %s2173 = scalar_lea.vmem [#allocation2], 168
  %v2174 = vld [vmem:[%s2173] sm:$0xff]
  %v2175 = vld [vmem:[%s2173 + $0x8] sm:$0xff]
  %v2176 = vld [vmem:[%s3] sm:$0xff]
  %v2177 = vld [vmem:[%s3 + $0x8] sm:$0xff]
  %v2178 = vld [vmem:[%s3 + $0x10] sm:$0xff]
  %v2179 = vld [vmem:[%s3 + $0x18] sm:$0xff]
  %v2180 = vld [vmem:[%s3 + $0x20] sm:$0xff]
  %v2181 = vld [vmem:[%s3 + $0x28] sm:$0xff]
  %v2182 = vld [vmem:[%s3 + $0x30] sm:$0xff]
  %v2183 = vld [vmem:[%s3 + $0x38] sm:$0xff]
  %v2184 = vld [vmem:[%s3 + $0x40] sm:$0xff]
  %v2185 = vld [vmem:[%s3 + $0x48] sm:$0xff]
  %v2186 = vld [vmem:[%s3 + $0x50] sm:$0xff]
  %v2187 = vld [vmem:[%s3 + $0x58] sm:$0xff]
  %v2188 = vld [vmem:[%s3 + $0x60] sm:$0xff]
  %v2189 = vld [vmem:[%s3 + $0x68] sm:$0xff]
  %v2190 = vld [vmem:[%s3 + $0x70] sm:$0xff]
  %v2191 = vld [vmem:[%s3 + $0x78] sm:$0xff]
  %v2208 = vunpack.c.l.b16 %v2176
  %v2209 = vunpack.c.h.b16 %v2176
  %v2210 = vunpack.c.l.b16 %v2177
  %v2211 = vunpack.c.h.b16 %v2177
  %v2212 = vunpack.c.l.b16 %v2178
  %v2213 = vunpack.c.h.b16 %v2178
  %v2214 = vunpack.c.l.b16 %v2179
  %v2215 = vunpack.c.h.b16 %v2179
  %v2216 = vunpack.c.l.b16 %v2180
  %v2217 = vunpack.c.h.b16 %v2180
  %v2218 = vunpack.c.l.b16 %v2181
  %v2219 = vunpack.c.h.b16 %v2181
  %v2220 = vunpack.c.l.b16 %v2182
  %v2221 = vunpack.c.h.b16 %v2182
  %v2222 = vunpack.c.l.b16 %v2183
  %v2223 = vunpack.c.h.b16 %v2183
  %v2224 = vunpack.c.l.b16 %v2184
  %v2225 = vunpack.c.h.b16 %v2184
  %v2226 = vunpack.c.l.b16 %v2185
  %v2227 = vunpack.c.h.b16 %v2185
  %v2228 = vunpack.c.l.b16 %v2186
  %v2229 = vunpack.c.h.b16 %v2186
  %v2230 = vunpack.c.l.b16 %v2187
  %v2231 = vunpack.c.h.b16 %v2187
  %v2232 = vunpack.c.l.b16 %v2188
  %v2233 = vunpack.c.h.b16 %v2188
  %v2234 = vunpack.c.l.b16 %v2189
  %v2235 = vunpack.c.h.b16 %v2189
  %v2236 = vunpack.c.l.b16 %v2190
  %v2237 = vunpack.c.h.b16 %v2190
  %v2238 = vunpack.c.l.b16 %v2191
  %v2239 = vunpack.c.h.b16 %v2191
  %v2240 = vpack.c.b16 %v2210, %v2208
  %v2241 = vpack.c.b16 %v2211, %v2209
  %v2242 = vpack.c.b16 %v2214, %v2212
  %v2243 = vpack.c.b16 %v2215, %v2213
  %v2244 = vpack.c.b16 %v2218, %v2216
  %v2245 = vpack.c.b16 %v2219, %v2217
  %v2246 = vpack.c.b16 %v2222, %v2220
  %v2247 = vpack.c.b16 %v2223, %v2221
  %v2248 = vpack.c.b16 %v2226, %v2224
  %v2249 = vpack.c.b16 %v2227, %v2225
  %v2250 = vpack.c.b16 %v2230, %v2228
  %v2251 = vpack.c.b16 %v2231, %v2229
  %v2252 = vpack.c.b16 %v2234, %v2232
  %v2253 = vpack.c.b16 %v2235, %v2233
  %v2254 = vpack.c.b16 %v2238, %v2236
  %v2255 = vpack.c.b16 %v2239, %v2237
  %2272 = vmatprep.subr.bf16.mxu0 %v2241
  %2273 = vmatpush1.bf16.msra.mxu0 %v2240
  %2274 = vmatprep.subr.bf16.mxu0 %v2243
  %2275 = vmatpush1.bf16.msra.mxu0 %v2242
  %2276 = vmatprep.subr.bf16.mxu0 %v2245
  %2277 = vmatpush1.bf16.msra.mxu0 %v2244
  %2278 = vmatprep.subr.bf16.mxu0 %v2247
  %2279 = vmatpush1.bf16.msra.mxu0 %v2246
  %2280 = vmatprep.subr.bf16.mxu0 %v2249
  %2281 = vmatpush1.bf16.msra.mxu0 %v2248
  %2282 = vmatprep.subr.bf16.mxu0 %v2251
  %2283 = vmatpush1.bf16.msra.mxu0 %v2250
  %2284 = vmatprep.subr.bf16.mxu0 %v2253
  %2285 = vmatpush1.bf16.msra.mxu0 %v2252
  %2286 = vmatprep.subr.bf16.mxu0 %v2255
  %2287 = vmatpush1.bf16.msra.mxu0 %v2254
  %2288 = vmatprep.subr.bf16.mxu0 0
  %2289 = vmatpush1.bf16.msra.mxu0 0
  %2290 = vmatprep.subr.bf16.mxu0 0
  %2291 = vmatpush1.bf16.msra.mxu0 0
  %2292 = vmatprep.subr.bf16.mxu0 0
  %2293 = vmatpush1.bf16.msra.mxu0 0
  %2294 = vmatprep.subr.bf16.mxu0 0
  %2295 = vmatpush1.bf16.msra.mxu0 0
  %2296 = vmatprep.subr.bf16.mxu0 0
  %2297 = vmatpush1.bf16.msra.mxu0 0
  %2298 = vmatprep.subr.bf16.mxu0 0
  %2299 = vmatpush1.bf16.msra.mxu0 0
  %2300 = vmatprep.subr.bf16.mxu0 0
  %2301 = vmatpush1.bf16.msra.mxu0 0
  %2302 = vmatprep.subr.bf16.mxu0 0
  %2303 = vmatpush1.bf16.msra.mxu0 0
  %2304 = vmatprep.mubr.bf16.mxu0 0
  %2305 = vmatmul.mubr.bf16.gmra.mrb[0].mxu0 %v2172
  %v2306 = vpop.f32.mrb[0].mxu0
  %v2307 = vadd.f32 0.0, %v2306
  %v2308 = vpop.f32.mrb[0].mxu0
  %v2309 = vadd.f32 0.0, %v2308
  %v2310 = vpop.f32.mrb[0].mxu0
  %v2311 = vpop.f32.mrb[0].mxu0
  %2312 = vdwg.mxu0
  %v2313 = vadd.f32 %v2174, %v2307
  %v2314 = vadd.f32 %v2175, %v2309
  %v2315 = vxor.u32 %v2313, 2147483648
  %v2316 = vxor.u32 %v2314, 2147483648
  %v2317 = vmul.f32 %v2315, 1.442695
  %v2318 = vpow.pop %v2317
  %v2319 = vmul.f32 %v2316, 1.442695
  %v2320 = vpow.pop %v2319
  %v2321 = vadd.f32 %v2318, 1.0
  %v2322 = vadd.f32 %v2320, 1.0
  %v2323 = vrcp.pop %v2321
  %v2324 = vmul.f32 1.0, %v2323
  %v2325 = vrcp.pop %v2322
  %v2326 = vmul.f32 1.0, %v2325
  %v2327 = vld [vmem:[%s4] sm:$0xf]
  %v2328 = vld [vmem:[%s4 + $0x4] sm:$0xf]
  %v2329 = vld [vmem:[%s4 + $0x8] sm:$0xf]
  %v2330 = vld [vmem:[%s4 + $0xc] sm:$0xf]
  %v2331 = vld [vmem:[%s4 + $0x10] sm:$0xf]
  %v2332 = vld [vmem:[%s4 + $0x14] sm:$0xf]
  %v2333 = vld [vmem:[%s4 + $0x18] sm:$0xf]
  %v2334 = vld [vmem:[%s4 + $0x1c] sm:$0xf]
  %v2335 = vld [vmem:[%s4 + $0x20] sm:$0xf]
  %v2336 = vld [vmem:[%s4 + $0x24] sm:$0xf]
  %v2337 = vld [vmem:[%s4 + $0x28] sm:$0xf]
  %v2338 = vld [vmem:[%s4 + $0x2c] sm:$0xf]
  %v2339 = vld [vmem:[%s4 + $0x30] sm:$0xf]
  %v2340 = vld [vmem:[%s4 + $0x34] sm:$0xf]
  %v2341 = vld [vmem:[%s4 + $0x38] sm:$0xf]
  %v2342 = vld [vmem:[%s4 + $0x3c] sm:$0xf]
  %v2343 = vld [vmem:[%s2173 + $0x10] sm:$0xff]
  %v2360 = vunpack.c.l.b16 %v2327
  %v2361 = vunpack.c.l.b16 %v2328
  %v2362 = vunpack.c.l.b16 %v2329
  %v2363 = vunpack.c.l.b16 %v2330
  %v2364 = vunpack.c.l.b16 %v2331
  %v2365 = vunpack.c.l.b16 %v2332
  %v2366 = vunpack.c.l.b16 %v2333
  %v2367 = vunpack.c.l.b16 %v2334
  %v2368 = vunpack.c.l.b16 %v2335
  %v2369 = vunpack.c.l.b16 %v2336
  %v2370 = vunpack.c.l.b16 %v2337
  %v2371 = vunpack.c.l.b16 %v2338
  %v2372 = vunpack.c.l.b16 %v2339
  %v2373 = vunpack.c.l.b16 %v2340
  %v2374 = vunpack.c.l.b16 %v2341
  %v2375 = vunpack.c.l.b16 %v2342
  %v2376 = vpack.c.b16 %v2361, %v2360
  %v2377 = vpack.c.b16 %v2363, %v2362
  %v2378 = vpack.c.b16 %v2365, %v2364
  %v2379 = vpack.c.b16 %v2367, %v2366
  %v2380 = vpack.c.b16 %v2369, %v2368
  %v2381 = vpack.c.b16 %v2371, %v2370
  %v2382 = vpack.c.b16 %v2373, %v2372
  %v2383 = vpack.c.b16 %v2375, %v2374
  %2392 = vmatprep.subr.bf16.mxu0 0
  %2393 = vmatpush1.bf16.msra.mxu0 %v2376
  %2394 = vmatprep.subr.bf16.mxu0 0
  %2395 = vmatpush1.bf16.msra.mxu0 %v2377
  %2396 = vmatprep.subr.bf16.mxu0 0
  %2397 = vmatpush1.bf16.msra.mxu0 %v2378
  %2398 = vmatprep.subr.bf16.mxu0 0
  %2399 = vmatpush1.bf16.msra.mxu0 %v2379
  %2400 = vmatprep.subr.bf16.mxu0 0
  %2401 = vmatpush1.bf16.msra.mxu0 %v2380
  %2402 = vmatprep.subr.bf16.mxu0 0
  %2403 = vmatpush1.bf16.msra.mxu0 %v2381
  %2404 = vmatprep.subr.bf16.mxu0 0
  %2405 = vmatpush1.bf16.msra.mxu0 %v2382
  %2406 = vmatprep.subr.bf16.mxu0 0
  %2407 = vmatpush1.bf16.msra.mxu0 %v2383
  %2408 = vmatprep.subr.bf16.mxu0 0
  %2409 = vmatpush1.bf16.msra.mxu0 0
  %2410 = vmatprep.subr.bf16.mxu0 0
  %2411 = vmatpush1.bf16.msra.mxu0 0
  %2412 = vmatprep.subr.bf16.mxu0 0
  %2413 = vmatpush1.bf16.msra.mxu0 0
  %2414 = vmatprep.subr.bf16.mxu0 0
  %2415 = vmatpush1.bf16.msra.mxu0 0
  %2416 = vmatprep.subr.bf16.mxu0 0
  %2417 = vmatpush1.bf16.msra.mxu0 0
  %2418 = vmatprep.subr.bf16.mxu0 0
  %2419 = vmatpush1.bf16.msra.mxu0 0
  %2420 = vmatprep.subr.bf16.mxu0 0
  %2421 = vmatpush1.bf16.msra.mxu0 0
  %2422 = vmatprep.subr.bf16.mxu0 0
  %2423 = vmatpush1.bf16.msra.mxu0 0
  %2424 = vmatprep.mubr.bf16.mxu0 0
  %2425 = vmatmul.mubr.bf16.gmra.mrb[0].mxu0 %v2172
  %v2426 = vpop.f32.mrb[0].mxu0
  %v2427 = vadd.f32 %v460, %v2426
  %v2428 = vpop.f32.mrb[0].mxu0
  %v2429 = vpop.f32.mrb[0].mxu0
  %v2430 = vpop.f32.mrb[0].mxu0
  %2431 = vdwg.mxu0
  %v2432 = vmul.f32 %v2324, %v2427
  %v2433 = vadd.f32 %v2343, %v2432
  %v2434 = vtanh.pop %v2433
  %v2435 = vsub.f32 1.0, %v2326
  %v2436 = vmul.f32 %v2435, %v2434
  %v2437 = vmul.f32 %v2326, %v2169
  %v2438 = vadd.f32 %v2436, %v2437
  %s2439 = scalar_lea.vmem %s7, 56
  %2440 = vst [vmem:[%s2439] sm:$0xff] %v2438
  %2441 = vst [vmem:[%s8] sm:$0xff] %v2438
  // Predicated region
  $region34: #{decoder_rnn_forward.1} parent=0 // pred_check
    _
  $region35: #{decoder_rnn_forward.1} parent=0 // pred_check_branch
    %2443 = sbr.rel (0) target = $region37
  $region36: #{decoder_rnn_forward.1} parent=0 // pred_region
    _
  $region37: #{decoder_rnn_forward.1} parent=0 // pred_fallthru
    _
  // Predicated region
  $region38: #{decoder_rnn_forward.1} parent=0 // pred_check
    _
  $region39: #{decoder_rnn_forward.1} parent=0 // pred_check_branch
    %2445 = sbr.rel (0) target = $region41
  $region40: #{decoder_rnn_forward.1} parent=0 // pred_region
    _
  $region41: #{decoder_rnn_forward.1} parent=0 // pred_fallthru
    _
  // Predicated region
  $region42: #{decoder_rnn_forward.1} parent=0 // pred_check
    _
  $region43: #{decoder_rnn_forward.1} parent=0 // pred_check_branch
    %2447 = sbr.rel (0) target = $region45
  $region44: #{decoder_rnn_forward.1} parent=0 // pred_region
    _
  $region45: #{decoder_rnn_forward.1} parent=0 // pred_fallthru
    _
  // Predicated region
  $region46: #{decoder_rnn_forward.1} parent=0 // pred_check
    _
  $region47: #{decoder_rnn_forward.1} parent=0 // pred_check_branch
    %2449 = sbr.rel (0) target = $region49
  $region48: #{decoder_rnn_forward.1} parent=0 // pred_region
    _
  $region49: #{decoder_rnn_forward.1} parent=0 // pred_fallthru
    _

</llo_original>
